<compile_context>
chip_gen: v6e
topology: v6e:2x2x1
jax: 0.10.0
libtpu: 0.0.40
codegen_flags: <defaults>
</compile_context>

<pallas_src>
import functools

import jax
import jax.numpy as jnp
from jax.experimental import pallas as pl
from jax.experimental.pallas import tpu as pltpu


def _round_up(x, m):
    return ((x + m - 1) // m) * m


# ----------------------------------------------------------------------------
# Pallas kernel 1: conv-as-matmul, fused bias + ReLU, M-tiled grid, bf16 MXU.
# ----------------------------------------------------------------------------
def _conv_matmul_kernel(x_ref, w_ref, b_ref, o_ref):
    acc = jnp.dot(x_ref[...], w_ref[...], preferred_element_type=jnp.float32)
    o_ref[...] = jnp.maximum(acc + b_ref[...], 0.0).astype(o_ref.dtype)


def _conv_matmul(patches_bf16, w2d_p, b_p, tm):
    """patches: (Mp, Kp) bf16, w2d_p: (Kp, Np) bf16, b_p: (1, Np) f32."""
    Mp, Kp = patches_bf16.shape
    _, Np = w2d_p.shape
    return pl.pallas_call(
        _conv_matmul_kernel,
        out_shape=jax.ShapeDtypeStruct((Mp, Np), jnp.float32),
        grid=(Mp // tm,),
        in_specs=[
            pl.BlockSpec((tm, Kp), lambda i: (i, 0)),
            pl.BlockSpec((Kp, Np), lambda i: (0, 0)),
            pl.BlockSpec((1, Np), lambda i: (0, 0)),
        ],
        out_specs=pl.BlockSpec((tm, Np), lambda i: (i, 0)),
        compiler_params=pltpu.CompilerParams(
            dimension_semantics=("parallel",)),
    )(patches_bf16, w2d_p, b_p)


# ----------------------------------------------------------------------------
# Pallas kernel 2: fused scalar-MLP + fusion-MLP + noise + action head.
# All weights VMEM-resident; fusion layer 1 accumulates scalar & image blocks
# (no concat materialization).
# ----------------------------------------------------------------------------
def _fused_mlp_head_kernel(xs_ref, xi_ref,
                           sw1_ref, sb1_ref, sw2_ref, sb2_ref,
                           fw1s_ref, fw1i_ref, fb1_ref,
                           fw2_ref, fb2_ref,
                           aw_ref, ab_ref, noise_ref,
                           o_ref):
    f32 = jnp.float32
    # scalar_net: Linear+ReLU, Linear+ReLU (Dropout = identity in eval mode)
    h = jnp.dot(xs_ref[...], sw1_ref[...], preferred_element_type=f32) + sb1_ref[...]
    h = jnp.maximum(h, 0.0)
    h = jnp.dot(h, sw2_ref[...], preferred_element_type=f32) + sb2_ref[...]
    h = jnp.maximum(h, 0.0)
    # fusion layer 1: split-K accumulate over [scalar_features | image_features]
    f = jnp.dot(h, fw1s_ref[...], preferred_element_type=f32)
    f = f + jnp.dot(xi_ref[...], fw1i_ref[...], preferred_element_type=f32)
    f = jnp.maximum(f + fb1_ref[...], 0.0)
    # fusion layer 2
    f = jnp.dot(f, fw2_ref[...], preferred_element_type=f32) + fb2_ref[...]
    f = jnp.maximum(f, 0.0)
    # eval-mode gaussian noise (precomputed 0.1 * N(0,1))
    f = f + noise_ref[...]
    # action head
    o_ref[...] = (jnp.dot(f, aw_ref[...], preferred_element_type=f32)
                  + ab_ref[...]).astype(o_ref.dtype)


def _fused_mlp_head(x_s, x_img, prep, noise):
    B, Ds = x_s.shape
    _, Di = x_img.shape
    Bp = noise.shape[0]
    Ksp = prep['s_w1'].shape[0]
    Kip = prep['f_w1i'].shape[0]
    Na = prep['a_w'].shape[1]

    xsp = jnp.zeros((Bp, Ksp), jnp.float32).at[:B, :Ds].set(x_s.astype(jnp.float32))
    xip = jnp.zeros((Bp, Kip), jnp.float32).at[:B, :Di].set(x_img.astype(jnp.float32))

    return pl.pallas_call(
        _fused_mlp_head_kernel,
        out_shape=jax.ShapeDtypeStruct((Bp, Na), jnp.float32),
    )(xsp, xip,
      prep['s_w1'], prep['s_b1'], prep['s_w2'], prep['s_b2'],
      prep['f_w1s'], prep['f_w1i'], prep['f_b1'],
      prep['f_w2'], prep['f_b2'],
      prep['a_w'], prep['a_b'], noise)


# ----------------------------------------------------------------------------
# Glue: channels-last im2col (VALID padding).  No transposes between layers.
# Feature ordering is (kh, kw, Cin) with Cin fastest.
# ----------------------------------------------------------------------------
def im2col_nhwc(x, kh, kw, stride):
    B, H, W, C = x.shape
    Ho = (H - kh) // stride + 1
    Wo = (W - kw) // stride + 1
    cols = []
    for i in range(kh):
        for j in range(kw):
            cols.append(x[:, i:i + stride * Ho:stride, j:j + stride * Wo:stride, :])
    p = jnp.stack(cols, axis=3)                    # (B, Ho, Wo, kh*kw, C)
    p = p.reshape(B * Ho * Wo, kh * kw * C)
    return p, Ho, Wo


def conv_bn_relu(x_nhwc, w2d_p, b_p, kh, kw, stride, cout):
    """Conv2d(VALID) + folded eval-mode BN + ReLU.  x stays NHWC throughout."""
    B = x_nhwc.shape[0]
    patches, Ho, Wo = im2col_nhwc(x_nhwc, kh, kw, stride)   # (M, K) f32
    M, K = patches.shape
    Kp, Np = w2d_p.shape
    tm = 128 if M >= 128 else _round_up(M, 16)
    Mp = _round_up(M, tm)
    xp = jnp.zeros((Mp, Kp), jnp.bfloat16).at[:M, :K].set(patches.astype(jnp.bfloat16))
    out = _conv_matmul(xp, w2d_p, b_p, tm)                  # (Mp, Np) f32
    return out[:M, :cout].reshape(B, Ho, Wo, cout)


# ----------------------------------------------------------------------------
# Parameter init (deterministic, synthetic, torch-style layout)
# ----------------------------------------------------------------------------
def init_params(key, other_dim, task_dim, img_c, img_hw, action_dim):
    keys = jax.random.split(key, 32)
    k = iter(keys)

    def lin(kk, din, dout, std=0.05):
        return (jax.random.normal(kk, (din, dout), jnp.float32) * std,
                jax.random.normal(next(k), (dout,), jnp.float32) * 0.01)

    def bn(c):
        return (1.0 + 0.05 * jax.random.normal(next(k), (c,), jnp.float32),   # gamma
                0.01 * jax.random.normal(next(k), (c,), jnp.float32),         # beta
                0.01 * jax.random.normal(next(k), (c,), jnp.float32),         # running_mean
                1.0 + 0.05 * jnp.abs(jax.random.normal(next(k), (c,), jnp.float32)))  # var

    p = {}
    sin = other_dim + task_dim
    p['s_w1'], p['s_b1'] = lin(next(k), sin, 256)
    p['s_w2'], p['s_b2'] = lin(next(k), 256, 128)

    p['c1_w'] = jax.random.normal(next(k), (32, img_c, 8, 8), jnp.float32) * 0.05
    p['c1_b'] = 0.01 * jax.random.normal(next(k), (32,), jnp.float32)
    p['bn1'] = bn(32)
    p['c2_w'] = jax.random.normal(next(k), (64, 32, 4, 4), jnp.float32) * 0.05
    p['c2_b'] = 0.01 * jax.random.normal(next(k), (64,), jnp.float32)
    p['bn2'] = bn(64)
    p['c3_w'] = jax.random.normal(next(k), (64, 64, 3, 3), jnp.float32) * 0.05
    p['c3_b'] = 0.01 * jax.random.normal(next(k), (64,), jnp.float32)
    p['bn3'] = bn(64)

    h1 = (img_hw - 8) // 4 + 1
    h2 = (h1 - 4) // 2 + 1
    h3 = (h2 - 3) // 1 + 1
    conv_out = 64 * h3 * h3

    p['f_w1'], p['f_b1'] = lin(next(k), 128 + conv_out, 256)
    p['f_w2'], p['f_b2'] = lin(next(k), 256, 128)

    # action head: nn.init.normal_(weight, mean=0, std=0.01)
    p['a_w'] = jax.random.normal(next(k), (128, action_dim), jnp.float32) * 0.01
    p['a_b'] = 0.01 * jax.random.normal(next(k), (action_dim,), jnp.float32)
    return p


# ----------------------------------------------------------------------------
# One-time parameter preparation: BN folding, NHWC weight reordering, padding.
# ----------------------------------------------------------------------------
def prepare_params(p, img_hw):
    eps = 1e-5
    prep = {}

    def pad2d(w2d, dtype):
        K, N = w2d.shape
        Kp, Np = _round_up(K, 128), _round_up(N, 128)
        return jnp.zeros((Kp, Np), dtype).at[:K, :N].set(w2d.astype(dtype))

    def pad_bias(b):
        N = b.shape[0]
        Np = _round_up(N, 128)
        return jnp.zeros((1, Np), jnp.float32).at[0, :N].set(b.astype(jnp.float32))

    def fold_conv(w, b, bn):
        gamma, beta, mean, var = bn
        scale = gamma / jnp.sqrt(var + eps)
        wf = w * scale[:, None, None, None]
        bf = (b - mean) * scale + beta
        return wf, bf

    def conv_w2d(w):  # (Cout, Cin, kh, kw) -> (kh*kw*Cin, Cout) NHWC-patch order
        Cout, Cin, kh, kw = w.shape
        return w.transpose(2, 3, 1, 0).reshape(kh * kw * Cin, Cout)

    for idx, name in ((1, 'c1'), (2, 'c2'), (3, 'c3')):
        wf, bf = fold_conv(p[f'{name}_w'], p[f'{name}_b'], p[f'bn{idx}'])
        prep[f'{name}_w2d'] = pad2d(conv_w2d(wf), jnp.bfloat16)
        prep[f'{name}_b'] = pad_bias(bf)

    prep['s_w1'] = pad2d(p['s_w1'], jnp.float32)
    prep['s_b1'] = pad_bias(p['s_b1'])
    prep['s_w2'] = pad2d(p['s_w2'], jnp.float32)
    prep['s_b2'] = pad_bias(p['s_b2'])

    # fusion layer 1: split into scalar-feature rows and image-feature rows,
    # and permute the image rows from torch NCHW-flatten to NHWC-flatten order.
    h1 = (img_hw - 8) // 4 + 1
    h2 = (h1 - 4) // 2 + 1
    h3 = (h2 - 3) // 1 + 1
    conv_out = 64 * h3 * h3
    f_w1 = p['f_w1']
    f_w1_s = f_w1[:128]
    f_w1_i = f_w1[128:].reshape(64, h3, h3, 256).transpose(1, 2, 0, 3).reshape(conv_out, 256)
    prep['f_w1s'] = pad2d(f_w1_s, jnp.float32)
    prep['f_w1i'] = pad2d(f_w1_i, jnp.float32)
    prep['f_b1'] = pad_bias(p['f_b1'])
    prep['f_w2'] = pad2d(p['f_w2'], jnp.float32)
    prep['f_b2'] = pad_bias(p['f_b2'])

    prep['a_w'] = pad2d(p['a_w'], jnp.float32)
    prep['a_b'] = pad_bias(p['a_b'])
    return prep


# ----------------------------------------------------------------------------
# Forward pass (eval_mode=True semantics: dropout off, BN running stats, +noise)
# ----------------------------------------------------------------------------
@functools.partial(jax.jit, static_argnames=("action_dim",))
def full_model_forward(prep, other, task, image, noise_key, *, action_dim):
    B = other.shape[0]
    Bp = _round_up(B, 8)

    # image branch: NCHW -> NHWC once, then 3x (im2col + Pallas matmul/bias/ReLU)
    y = image.transpose(0, 2, 3, 1)
    y = conv_bn_relu(y, prep['c1_w2d'], prep['c1_b'], 8, 8, 4, 32)
    y = conv_bn_relu(y, prep['c2_w2d'], prep['c2_b'], 4, 4, 2, 64)
    y = conv_bn_relu(y, prep['c3_w2d'], prep['c3_b'], 3, 3, 1, 64)
    x_img = y.reshape(B, -1)      # NHWC flatten; f_w1i rows were permuted to match

    # scalar branch input (tiny concat), noise precomputed for in-kernel add
    x_s = jnp.concatenate([other, task], axis=1)
    noise = jax.random.normal(noise_key, (Bp, 128), jnp.float32) * 0.1

    # one fused Pallas call: scalar MLP + fusion MLP + noise + action head
    out = _fused_mlp_head(x_s, x_img, prep, noise)
    return out[:B, :action_dim]


if __name__ == "__main__":
    B = 2
    OTHER_DIM = 12
    TASK_DIM = 20          # "+ 20" in scalar_input_dim
    IMG_C = 4
    IMG_HW = 64            # conv chain: 64 -> 15 -> 6 -> 4 => conv features = 64*4*4 = 1024
    ACTION_DIM = 6

    root = jax.random.PRNGKey(0)
    k_params, k_other, k_task, k_img, k_noise = jax.random.split(root, 5)

    params = init_params(k_params, OTHER_DIM, TASK_DIM, IMG_C, IMG_HW, ACTION_DIM)
    prep = prepare_params(params, IMG_HW)     # fold BN + pad weights ONCE

    other = jax.random.normal(k_other, (B, OTHER_DIM), jnp.float32)
    task = jax.random.normal(k_task, (B, TASK_DIM), jnp.float32)
    image = jax.random.normal(k_img, (B, IMG_C, IMG_HW, IMG_HW), jnp.float32)

    logits = full_model_forward(prep, other, task, image, k_noise,
                                action_dim=ACTION_DIM)
    logits = jax.block_until_ready(logits)
    assert logits.shape == (B, ACTION_DIM)
    assert bool(jnp.all(jnp.isfinite(logits)))
    print("KERNEL_OK")
</pallas_src>

<mosaic_0001>
module attributes {stable_mosaic.version = 11 : i64} {
  func.func @_conv_matmul_kernel(%arg0: i32, %arg1: memref<128x256xbf16, #tpu.memory_space<vmem>>, %arg2: memref<256x128xbf16, #tpu.memory_space<vmem>>, %arg3: memref<1x128xf32, #tpu.memory_space<vmem>>, %arg4: memref<128x128xf32, #tpu.memory_space<vmem>>) attributes {dimension_semantics = [#tpu.dimension_semantics<parallel>], iteration_bounds = array<i64: 4>, scalar_prefetch = 0 : i64, scratch_operands = 0 : i64, tpu.core_type = #tpu.core_type<tc>, window_params = [{transform_indices = @transform_0, window_bounds = array<i64: 128, 256>}, {pipeline_mode = #tpu.pipeline_mode<synchronous>, transform_indices = @transform_1, window_bounds = array<i64: 256, 128>}, {pipeline_mode = #tpu.pipeline_mode<synchronous>, transform_indices = @transform_2, window_bounds = array<i64: 1, 128>}, {transform_indices = @transform_3, window_bounds = array<i64: 128, 128>}]} {
    %c0 = arith.constant 0 : index
    %c0_0 = arith.constant 0 : index
    %0 = vector.load %arg1[%c0, %c0_0] : memref<128x256xbf16, #tpu.memory_space<vmem>>, vector<128x256xbf16>
    %c0_1 = arith.constant 0 : index
    %c0_2 = arith.constant 0 : index
    %1 = vector.load %arg2[%c0_1, %c0_2] : memref<256x128xbf16, #tpu.memory_space<vmem>>, vector<256x128xbf16>
    %cst = arith.constant dense<0.000000e+00> : vector<128x128xf32>
    %2 = tpu.matmul %0, %1, %cst {dimension_numbers = #tpu.dot_dimension_numbers<[1], [0], [0], [1], [0, 0, 1, 1], [], []>} : vector<128x256xbf16>, vector<256x128xbf16>, vector<128x128xf32> -> vector<128x128xf32>
    %c0_3 = arith.constant 0 : index
    %c0_4 = arith.constant 0 : index
    %3 = vector.load %arg3[%c0_3, %c0_4] : memref<1x128xf32, #tpu.memory_space<vmem>>, vector<1x128xf32>
    %4 = vector.broadcast %3 : vector<1x128xf32> to vector<128x128xf32>
    %5 = arith.addf %2, %4 : vector<128x128xf32>
    %cst_5 = arith.constant 0.000000e+00 : f32
    %6 = vector.broadcast %cst_5 : f32 to vector<128x128xf32>
    %7 = arith.maximumf %5, %6 : vector<128x128xf32>
    %c0_6 = arith.constant 0 : index
    %c0_7 = arith.constant 0 : index
    %8 = vector.load %arg4[%c0_6, %c0_7] : memref<128x128xf32, #tpu.memory_space<vmem>>, vector<128x128xf32>
    tpu.vector_store %arg4[%c0_6, %c0_7], %7 {strides = array<i32>} : memref<128x128xf32, #tpu.memory_space<vmem>>, vector<128x128xf32>,
    return
  }
  func.func @transform_0(%arg0: i32) -> (i32, i32) {
    %c0_i32 = arith.constant 0 : i32
    %c0_i32_0 = arith.constant 0 : i32
    return %arg0, %c0_i32 : i32, i32
  }
  func.func @transform_1(%arg0: i32) -> (i32, i32) {
    %c0_i32 = arith.constant 0 : i32
    %c0_i32_0 = arith.constant 0 : i32
    %c0_i32_1 = arith.constant 0 : i32
    return %c0_i32, %c0_i32_0 : i32, i32
  }
  func.func @transform_2(%arg0: i32) -> (i32, i32) {
    %c0_i32 = arith.constant 0 : i32
    %c0_i32_0 = arith.constant 0 : i32
    %c0_i32_1 = arith.constant 0 : i32
    return %c0_i32, %c0_i32_0 : i32, i32
  }
  func.func @transform_3(%arg0: i32) -> (i32, i32) {
    %c0_i32 = arith.constant 0 : i32
    %c0_i32_0 = arith.constant 0 : i32
    return %arg0, %c0_i32 : i32, i32
  }
}

module attributes {stable_mosaic.version = 11 : i64} {
  func.func @_conv_matmul_kernel(%arg0: i32, %arg1: memref<80x512xbf16, #tpu.memory_space<vmem>>, %arg2: memref<512x128xbf16, #tpu.memory_space<vmem>>, %arg3: memref<1x128xf32, #tpu.memory_space<vmem>>, %arg4: memref<80x128xf32, #tpu.memory_space<vmem>>) attributes {dimension_semantics = [#tpu.dimension_semantics<parallel>], iteration_bounds = array<i64: 1>, scalar_prefetch = 0 : i64, scratch_operands = 0 : i64, tpu.core_type = #tpu.core_type<tc>, window_params = [{transform_indices = @transform_0, window_bounds = array<i64: 80, 512>}, {pipeline_mode = #tpu.pipeline_mode<synchronous>, transform_indices = @transform_1, window_bounds = array<i64: 512, 128>}, {pipeline_mode = #tpu.pipeline_mode<synchronous>, transform_indices = @transform_2, window_bounds = array<i64: 1, 128>}, {transform_indices = @transform_3, window_bounds = array<i64: 80, 128>}]} {
    %c0 = arith.constant 0 : index
    %c0_0 = arith.constant 0 : index
    %0 = vector.load %arg1[%c0, %c0_0] : memref<80x512xbf16, #tpu.memory_space<vmem>>, vector<80x512xbf16>
    %c0_1 = arith.constant 0 : index
    %c0_2 = arith.constant 0 : index
    %1 = vector.load %arg2[%c0_1, %c0_2] : memref<512x128xbf16, #tpu.memory_space<vmem>>, vector<512x128xbf16>
    %cst = arith.constant dense<0.000000e+00> : vector<80x128xf32>
    %2 = tpu.matmul %0, %1, %cst {dimension_numbers = #tpu.dot_dimension_numbers<[1], [0], [0], [1], [0, 0, 1, 1], [], []>} : vector<80x512xbf16>, vector<512x128xbf16>, vector<80x128xf32> -> vector<80x128xf32>
    %c0_3 = arith.constant 0 : index
    %c0_4 = arith.constant 0 : index
    %3 = vector.load %arg3[%c0_3, %c0_4] : memref<1x128xf32, #tpu.memory_space<vmem>>, vector<1x128xf32>
    %4 = vector.broadcast %3 : vector<1x128xf32> to vector<80x128xf32>
    %5 = arith.addf %2, %4 : vector<80x128xf32>
    %cst_5 = arith.constant 0.000000e+00 : f32
    %6 = vector.broadcast %cst_5 : f32 to vector<80x128xf32>
    %7 = arith.maximumf %5, %6 : vector<80x128xf32>
    %c0_6 = arith.constant 0 : index
    %c0_7 = arith.constant 0 : index
    %8 = vector.load %arg4[%c0_6, %c0_7] : memref<80x128xf32, #tpu.memory_space<vmem>>, vector<80x128xf32>
    tpu.vector_store %arg4[%c0_6, %c0_7], %7 {strides = array<i32>} : memref<80x128xf32, #tpu.memory_space<vmem>>, vector<80x128xf32>,
    return
  }
  func.func @transform_0(%arg0: i32) -> (i32, i32) {
    %c0_i32 = arith.constant 0 : i32
    %c0_i32_0 = arith.constant 0 : i32
    return %arg0, %c0_i32 : i32, i32
  }
  func.func @transform_1(%arg0: i32) -> (i32, i32) {
    %c0_i32 = arith.constant 0 : i32
    %c0_i32_0 = arith.constant 0 : i32
    %c0_i32_1 = arith.constant 0 : i32
    return %c0_i32, %c0_i32_0 : i32, i32
  }
  func.func @transform_2(%arg0: i32) -> (i32, i32) {
    %c0_i32 = arith.constant 0 : i32
    %c0_i32_0 = arith.constant 0 : i32
    %c0_i32_1 = arith.constant 0 : i32
    return %c0_i32, %c0_i32_0 : i32, i32
  }
  func.func @transform_3(%arg0: i32) -> (i32, i32) {
    %c0_i32 = arith.constant 0 : i32
    %c0_i32_0 = arith.constant 0 : i32
    return %arg0, %c0_i32 : i32, i32
  }
}

module attributes {stable_mosaic.version = 11 : i64} {
  func.func @_conv_matmul_kernel(%arg0: i32, %arg1: memref<32x640xbf16, #tpu.memory_space<vmem>>, %arg2: memref<640x128xbf16, #tpu.memory_space<vmem>>, %arg3: memref<1x128xf32, #tpu.memory_space<vmem>>, %arg4: memref<32x128xf32, #tpu.memory_space<vmem>>) attributes {dimension_semantics = [#tpu.dimension_semantics<parallel>], iteration_bounds = array<i64: 1>, scalar_prefetch = 0 : i64, scratch_operands = 0 : i64, tpu.core_type = #tpu.core_type<tc>, window_params = [{transform_indices = @transform_0, window_bounds = array<i64: 32, 640>}, {pipeline_mode = #tpu.pipeline_mode<synchronous>, transform_indices = @transform_1, window_bounds = array<i64: 640, 128>}, {pipeline_mode = #tpu.pipeline_mode<synchronous>, transform_indices = @transform_2, window_bounds = array<i64: 1, 128>}, {transform_indices = @transform_3, window_bounds = array<i64: 32, 128>}]} {
    %c0 = arith.constant 0 : index
    %c0_0 = arith.constant 0 : index
    %0 = vector.load %arg1[%c0, %c0_0] : memref<32x640xbf16, #tpu.memory_space<vmem>>, vector<32x640xbf16>
    %c0_1 = arith.constant 0 : index
    %c0_2 = arith.constant 0 : index
    %1 = vector.load %arg2[%c0_1, %c0_2] : memref<640x128xbf16, #tpu.memory_space<vmem>>, vector<640x128xbf16>
    %cst = arith.constant dense<0.000000e+00> : vector<32x128xf32>
    %2 = tpu.matmul %0, %1, %cst {dimension_numbers = #tpu.dot_dimension_numbers<[1], [0], [0], [1], [0, 0, 1, 1], [], []>} : vector<32x640xbf16>, vector<640x128xbf16>, vector<32x128xf32> -> vector<32x128xf32>
    %c0_3 = arith.constant 0 : index
    %c0_4 = arith.constant 0 : index
    %3 = vector.load %arg3[%c0_3, %c0_4] : memref<1x128xf32, #tpu.memory_space<vmem>>, vector<1x128xf32>
    %4 = vector.broadcast %3 : vector<1x128xf32> to vector<32x128xf32>
    %5 = arith.addf %2, %4 : vector<32x128xf32>
    %cst_5 = arith.constant 0.000000e+00 : f32
    %6 = vector.broadcast %cst_5 : f32 to vector<32x128xf32>
    %7 = arith.maximumf %5, %6 : vector<32x128xf32>
    %c0_6 = arith.constant 0 : index
    %c0_7 = arith.constant 0 : index
    %8 = vector.load %arg4[%c0_6, %c0_7] : memref<32x128xf32, #tpu.memory_space<vmem>>, vector<32x128xf32>
    tpu.vector_store %arg4[%c0_6, %c0_7], %7 {strides = array<i32>} : memref<32x128xf32, #tpu.memory_space<vmem>>, vector<32x128xf32>,
    return
  }
  func.func @transform_0(%arg0: i32) -> (i32, i32) {
    %c0_i32 = arith.constant 0 : i32
    %c0_i32_0 = arith.constant 0 : i32
    return %arg0, %c0_i32 : i32, i32
  }
  func.func @transform_1(%arg0: i32) -> (i32, i32) {
    %c0_i32 = arith.constant 0 : i32
    %c0_i32_0 = arith.constant 0 : i32
    %c0_i32_1 = arith.constant 0 : i32
    return %c0_i32, %c0_i32_0 : i32, i32
  }
  func.func @transform_2(%arg0: i32) -> (i32, i32) {
    %c0_i32 = arith.constant 0 : i32
    %c0_i32_0 = arith.constant 0 : i32
    %c0_i32_1 = arith.constant 0 : i32
    return %c0_i32, %c0_i32_0 : i32, i32
  }
  func.func @transform_3(%arg0: i32) -> (i32, i32) {
    %c0_i32 = arith.constant 0 : i32
    %c0_i32_0 = arith.constant 0 : i32
    return %arg0, %c0_i32 : i32, i32
  }
}

module attributes {stable_mosaic.version = 11 : i64} {
  func.func @_fused_mlp_head_kernel(%arg0: memref<8x128xf32, #tpu.memory_space<vmem>>, %arg1: memref<8x1024xf32, #tpu.memory_space<vmem>>, %arg2: memref<128x256xf32, #tpu.memory_space<vmem>>, %arg3: memref<1x256xf32, #tpu.memory_space<vmem>>, %arg4: memref<256x128xf32, #tpu.memory_space<vmem>>, %arg5: memref<1x128xf32, #tpu.memory_space<vmem>>, %arg6: memref<128x256xf32, #tpu.memory_space<vmem>>, %arg7: memref<1024x256xf32, #tpu.memory_space<vmem>>, %arg8: memref<1x256xf32, #tpu.memory_space<vmem>>, %arg9: memref<256x128xf32, #tpu.memory_space<vmem>>, %arg10: memref<1x128xf32, #tpu.memory_space<vmem>>, %arg11: memref<128x128xf32, #tpu.memory_space<vmem>>, %arg12: memref<1x128xf32, #tpu.memory_space<vmem>>, %arg13: memref<8x128xf32, #tpu.memory_space<vmem>>, %arg14: memref<8x128xf32, #tpu.memory_space<vmem>>) attributes {dimension_semantics = [], scalar_prefetch = 0 : i64, scratch_operands = 0 : i64, tpu.core_type = #tpu.core_type<tc>} {
    %c0 = arith.constant 0 : index
    %c0_0 = arith.constant 0 : index
    %0 = vector.load %arg0[%c0, %c0_0] : memref<8x128xf32, #tpu.memory_space<vmem>>, vector<8x128xf32>
    %c0_1 = arith.constant 0 : index
    %c0_2 = arith.constant 0 : index
    %1 = vector.load %arg2[%c0_1, %c0_2] : memref<128x256xf32, #tpu.memory_space<vmem>>, vector<128x256xf32>
    %cst = arith.constant dense<0.000000e+00> : vector<8x256xf32>
    %2 = tpu.matmul %0, %1, %cst {dimension_numbers = #tpu.dot_dimension_numbers<[1], [0], [0], [1], [0, 0, 1, 1], [], []>} : vector<8x128xf32>, vector<128x256xf32>, vector<8x256xf32> -> vector<8x256xf32>
    %c0_3 = arith.constant 0 : index
    %c0_4 = arith.constant 0 : index
    %3 = vector.load %arg3[%c0_3, %c0_4] : memref<1x256xf32, #tpu.memory_space<vmem>>, vector<1x256xf32>
    %4 = vector.broadcast %3 : vector<1x256xf32> to vector<8x256xf32>
    %5 = arith.addf %2, %4 : vector<8x256xf32>
    %cst_5 = arith.constant 0.000000e+00 : f32
    %6 = vector.broadcast %cst_5 : f32 to vector<8x256xf32>
    %7 = arith.maximumf %5, %6 : vector<8x256xf32>
    %c0_6 = arith.constant 0 : index
    %c0_7 = arith.constant 0 : index
    %8 = vector.load %arg4[%c0_6, %c0_7] : memref<256x128xf32, #tpu.memory_space<vmem>>, vector<256x128xf32>
    %cst_8 = arith.constant dense<0.000000e+00> : vector<8x128xf32>
    %9 = tpu.matmul %7, %8, %cst_8 {dimension_numbers = #tpu.dot_dimension_numbers<[1], [0], [0], [1], [0, 0, 1, 1], [], []>} : vector<8x256xf32>, vector<256x128xf32>, vector<8x128xf32> -> vector<8x128xf32>
    %c0_9 = arith.constant 0 : index
    %c0_10 = arith.constant 0 : index
    %10 = vector.load %arg5[%c0_9, %c0_10] : memref<1x128xf32, #tpu.memory_space<vmem>>, vector<1x128xf32>
    %11 = vector.broadcast %10 : vector<1x128xf32> to vector<8x128xf32>
    %12 = arith.addf %9, %11 : vector<8x128xf32>
    %cst_11 = arith.constant 0.000000e+00 : f32
    %13 = vector.broadcast %cst_11 : f32 to vector<8x128xf32>
    %14 = arith.maximumf %12, %13 : vector<8x128xf32>
    %c0_12 = arith.constant 0 : index
    %c0_13 = arith.constant 0 : index
    %15 = vector.load %arg6[%c0_12, %c0_13] : memref<128x256xf32, #tpu.memory_space<vmem>>, vector<128x256xf32>
    %cst_14 = arith.constant dense<0.000000e+00> : vector<8x256xf32>
    %16 = tpu.matmul %14, %15, %cst_14 {dimension_numbers = #tpu.dot_dimension_numbers<[1], [0], [0], [1], [0, 0, 1, 1], [], []>} : vector<8x128xf32>, vector<128x256xf32>, vector<8x256xf32> -> vector<8x256xf32>
    %c0_15 = arith.constant 0 : index
    %c0_16 = arith.constant 0 : index
    %17 = vector.load %arg1[%c0_15, %c0_16] : memref<8x1024xf32, #tpu.memory_space<vmem>>, vector<8x1024xf32>
    %c0_17 = arith.constant 0 : index
    %c0_18 = arith.constant 0 : index
    %18 = vector.load %arg7[%c0_17, %c0_18] : memref<1024x256xf32, #tpu.memory_space<vmem>>, vector<1024x256xf32>
    %cst_19 = arith.constant dense<0.000000e+00> : vector<8x256xf32>
    %19 = tpu.matmul %17, %18, %cst_19 {dimension_numbers = #tpu.dot_dimension_numbers<[1], [0], [0], [1], [0, 0, 1, 1], [], []>} : vector<8x1024xf32>, vector<1024x256xf32>, vector<8x256xf32> -> vector<8x256xf32>
    %20 = arith.addf %16, %19 : vector<8x256xf32>
    %c0_20 = arith.constant 0 : index
    %c0_21 = arith.constant 0 : index
    %21 = vector.load %arg8[%c0_20, %c0_21] : memref<1x256xf32, #tpu.memory_space<vmem>>, vector<1x256xf32>
    %22 = vector.broadcast %21 : vector<1x256xf32> to vector<8x256xf32>
    %23 = arith.addf %20, %22 : vector<8x256xf32>
    %cst_22 = arith.constant 0.000000e+00 : f32
    %24 = vector.broadcast %cst_22 : f32 to vector<8x256xf32>
    %25 = arith.maximumf %23, %24 : vector<8x256xf32>
    %c0_23 = arith.constant 0 : index
    %c0_24 = arith.constant 0 : index
    %26 = vector.load %arg9[%c0_23, %c0_24] : memref<256x128xf32, #tpu.memory_space<vmem>>, vector<256x128xf32>
    %cst_25 = arith.constant dense<0.000000e+00> : vector<8x128xf32>
    %27 = tpu.matmul %25, %26, %cst_25 {dimension_numbers = #tpu.dot_dimension_numbers<[1], [0], [0], [1], [0, 0, 1, 1], [], []>} : vector<8x256xf32>, vector<256x128xf32>, vector<8x128xf32> -> vector<8x128xf32>
    %c0_26 = arith.constant 0 : index
    %c0_27 = arith.constant 0 : index
    %28 = vector.load %arg10[%c0_26, %c0_27] : memref<1x128xf32, #tpu.memory_space<vmem>>, vector<1x128xf32>
    %29 = vector.broadcast %28 : vector<1x128xf32> to vector<8x128xf32>
    %30 = arith.addf %27, %29 : vector<8x128xf32>
    %cst_28 = arith.constant 0.000000e+00 : f32
    %31 = vector.broadcast %cst_28 : f32 to vector<8x128xf32>
    %32 = arith.maximumf %30, %31 : vector<8x128xf32>
    %c0_29 = arith.constant 0 : index
    %c0_30 = arith.constant 0 : index
    %33 = vector.load %arg13[%c0_29, %c0_30] : memref<8x128xf32, #tpu.memory_space<vmem>>, vector<8x128xf32>
    %34 = arith.addf %32, %33 : vector<8x128xf32>
    %c0_31 = arith.constant 0 : index
    %c0_32 = arith.constant 0 : index
    %35 = vector.load %arg11[%c0_31, %c0_32] : memref<128x128xf32, #tpu.memory_space<vmem>>, vector<128x128xf32>
    %cst_33 = arith.constant dense<0.000000e+00> : vector<8x128xf32>
    %36 = tpu.matmul %34, %35, %cst_33 {dimension_numbers = #tpu.dot_dimension_numbers<[1], [0], [0], [1], [0, 0, 1, 1], [], []>} : vector<8x128xf32>, vector<128x128xf32>, vector<8x128xf32> -> vector<8x128xf32>
    %c0_34 = arith.constant 0 : index
    %c0_35 = arith.constant 0 : index
    %37 = vector.load %arg12[%c0_34, %c0_35] : memref<1x128xf32, #tpu.memory_space<vmem>>, vector<1x128xf32>
    %38 = vector.broadcast %37 : vector<1x128xf32> to vector<8x128xf32>
    %39 = arith.addf %36, %38 : vector<8x128xf32>
    %c0_36 = arith.constant 0 : index
    %c0_37 = arith.constant 0 : index
    %40 = vector.load %arg14[%c0_36, %c0_37] : memref<8x128xf32, #tpu.memory_space<vmem>>, vector<8x128xf32>
    tpu.vector_store %arg14[%c0_36, %c0_37], %39 {strides = array<i32>} : memref<8x128xf32, #tpu.memory_space<vmem>>, vector<8x128xf32>,
    return
  }
}

</mosaic_0001>

<llo_original>
// kernel: full_model_forward.4
$region0: #{full_model_forward.4}
  #allocation0 [shape = 'u32[]', space=smem, size = 0x4, offset = 0x4, fixed_abs, tag = 'smem constant byte address 0x4 - core index']
  #allocation1 [shape = 'u32[144,128]{1,0:T(1,128)}', space=vmem, size = 0x12000, scoped, tag = 'internal scratch']
  %s0 = inlined_call_operand.vmem [shape: bf16[512,256], index: 0, kind: input, shape index: {}]
  %s1 = inlined_call_operand.vmem [shape: bf16[256,128], index: 1, kind: input, shape index: {}]
  %s2 = inlined_call_operand.vmem [shape: f32[1,128], index: 2, kind: input, shape index: {}]
  %s3 = inlined_call_operand.vmem [shape: f32[512,128], index: 3, kind: output, shape index: {}]
  %s4 = sld [smem:[#allocation0]]
  $region45: #{full_model_forward.4} parent=0
    _
  %s6 = ssub.s32 1, %s4
  %s7 = scalar_select 0, %s6, %s4
  loop: start=0, step=1, limit=6
  $region2: #{full_model_forward.4} parent=0 // loop_pre_header
    _
  $region3: #{full_model_forward.4} parent=0 // loop_header
    %s9 = sphi 0, %s13
    %p10 = scmp.ge.s32.totalorder %s9, 6
    %s19 = sphi 0, %s21
    %s22 = sphi 0, %s19
    %s23 = sphi 0, %s22
    %s39 = sphi 0, %s23
    %s43 = sphi 0, %s43
    %s45 = sphi 0, %s43
    %s46 = sphi 0, %s45
    %s60 = sphi 0, %s46
    %s64 = sphi 0, %s64
    %s66 = sphi 0, %s64
    %s67 = sphi 0, %s66
    %s81 = sphi 0, %s67
    %s87 = sphi 0, %s89
    %s90 = sphi 0, %s87
    %s91 = sphi 0, %s90
    %s107 = sphi 0, %s91
  $region4: #{full_model_forward.4} parent=0 // loop_header_branch
    %12 = sbr.rel (%p10) target = $region8
  $region5: #{full_model_forward.4} parent=0 // loop_body
    %s14 = ssub.s32 %s9, 1
    %s15 = ssub.s32 %s9, 2
    %s16 = sadd.s32 %s9, 1
    %s17 = ssub.s32 %s9, %s16
    %p18 = scmp.eq.s32.totalorder %s17, 0
    %s20 = sadd.s32 %s19, 1
    %s21 = scalar_select %p18, %s19, %s20
    %p24 = pneg %p18
    %p25 = scmp.eq.s32.totalorder %s9, 3
    %p26 = por %p24, %p25
    %p27 = scmp.ne.s32.totalorder %s19, %s22
    %p28 = scmp.eq.s32.totalorder %s9, 0
    %p29 = por %p27, %p28
    %p30 = scmp.ne.s32.totalorder %s19, %s22
    %p31 = scmp.eq.s32.totalorder %s14, 3
    %p32 = por %p30, %p31
    %p33 = scmp.ne.s32.totalorder %s22, %s23
    %p34 = scmp.eq.s32.totalorder %s14, 0
    %p35 = por %p33, %p34
    %p36 = scmp.ne.s32.totalorder %s22, %s23
    %p37 = scmp.eq.s32.totalorder %s15, 3
    %p38 = por %p36, %p37
    %p40 = scmp.ne.s32.totalorder %s23, %s39
    %p41 = scmp.eq.s32.totalorder %s15, 0
    %p42 = por %p40, %p41
    %s44 = sadd.s32 %s43, 1
    %p47 = scmp.eq.s32.totalorder %s9, 3
    %p48 = scmp.ne.s32.totalorder %s43, %s45
    %p49 = scmp.eq.s32.totalorder %s9, 0
    %p50 = por %p48, %p49
    %p51 = scmp.ne.s32.totalorder %s43, %s45
    %p52 = scmp.eq.s32.totalorder %s14, 3
    %p53 = por %p51, %p52
    %p54 = scmp.ne.s32.totalorder %s45, %s46
    %p55 = scmp.eq.s32.totalorder %s14, 0
    %p56 = por %p54, %p55
    %p57 = scmp.ne.s32.totalorder %s45, %s46
    %p58 = scmp.eq.s32.totalorder %s15, 3
    %p59 = por %p57, %p58
    %p61 = scmp.ne.s32.totalorder %s46, %s60
    %p62 = scmp.eq.s32.totalorder %s15, 0
    %p63 = por %p61, %p62
    %s65 = sadd.s32 %s64, 1
    %p68 = scmp.eq.s32.totalorder %s9, 3
    %p69 = scmp.ne.s32.totalorder %s64, %s66
    %p70 = scmp.eq.s32.totalorder %s9, 0
    %p71 = por %p69, %p70
    %p72 = scmp.ne.s32.totalorder %s64, %s66
    %p73 = scmp.eq.s32.totalorder %s14, 3
    %p74 = por %p72, %p73
    %p75 = scmp.ne.s32.totalorder %s66, %s67
    %p76 = scmp.eq.s32.totalorder %s14, 0
    %p77 = por %p75, %p76
    %p78 = scmp.ne.s32.totalorder %s66, %s67
    %p79 = scmp.eq.s32.totalorder %s15, 3
    %p80 = por %p78, %p79
    %p82 = scmp.ne.s32.totalorder %s67, %s81
    %p83 = scmp.eq.s32.totalorder %s15, 0
    %p84 = por %p82, %p83
    %s85 = ssub.s32 %s9, %s16
    %p86 = scmp.eq.s32.totalorder %s85, 0
    %s88 = sadd.s32 %s87, 1
    %s89 = scalar_select %p86, %s87, %s88
    %p92 = pneg %p86
    %p93 = scmp.eq.s32.totalorder %s9, 3
    %p94 = por %p92, %p93
    %p95 = scmp.ne.s32.totalorder %s87, %s90
    %p96 = scmp.eq.s32.totalorder %s9, 0
    %p97 = por %p95, %p96
    %p98 = scmp.ne.s32.totalorder %s87, %s90
    %p99 = scmp.eq.s32.totalorder %s14, 3
    %p100 = por %p98, %p99
    %p101 = scmp.ne.s32.totalorder %s90, %s91
    %p102 = scmp.eq.s32.totalorder %s14, 0
    %p103 = por %p101, %p102
    %p104 = scmp.ne.s32.totalorder %s90, %s91
    %p105 = scmp.eq.s32.totalorder %s15, 3
    %p106 = por %p104, %p105
    %p108 = scmp.ne.s32.totalorder %s91, %s107
    %p109 = scmp.eq.s32.totalorder %s15, 0
    %p110 = por %p108, %p109
    %p111 = scmp.le.s32.totalorder 1, %s9
    %p112 = scmp.lt.s32.totalorder %s9, 5
    %p113 = pnand %p111, %p112
    %p114 = pneg %p113
    // Predicated region
    $region9: #{full_model_forward.4} parent=5 // pred_check
      _
    $region10: #{full_model_forward.4} parent=5 // pred_check_branch
      %116 = sbr.rel (%p113) target = $region12
    $region11: #{full_model_forward.4} parent=5 // pred_region
      %s117 = ssub.s32 %s9, 1
      // Predicated region
      $region13: #{full_model_forward.4} parent=11 // pred_check
        %p118 = pneg %p56
      $region14: #{full_model_forward.4} parent=11 // pred_check_branch
        %120 = sbr.rel (%p118) target = $region16
      $region15: #{full_model_forward.4} parent=11 // pred_region
        _
      $region16: #{full_model_forward.4} parent=11 // pred_fallthru
        _
      // Predicated region
      $region17: #{full_model_forward.4} parent=11 // pred_check
        %p121 = pneg %p77
      $region18: #{full_model_forward.4} parent=11 // pred_check_branch
        %123 = sbr.rel (%p121) target = $region20
      $region19: #{full_model_forward.4} parent=11 // pred_region
        _
      $region20: #{full_model_forward.4} parent=11 // pred_fallthru
        _
    $region12: #{full_model_forward.4} parent=5 // pred_fallthru
      _
    %p124 = scmp.lt.s32.totalorder %s9, 4
    // Predicated region
    $region21: #{full_model_forward.4} parent=5 // pred_check
      %p125 = pneg %p124
    $region22: #{full_model_forward.4} parent=5 // pred_check_branch
      %127 = sbr.rel (%p125) target = $region24
    $region23: #{full_model_forward.4} parent=5 // pred_region
      // Predicated region
      $region25: #{full_model_forward.4} parent=23 // pred_check
        %p128 = pneg %p29
      $region26: #{full_model_forward.4} parent=23 // pred_check_branch
        %130 = sbr.rel (%p128) target = $region28
      $region27: #{full_model_forward.4} parent=23 // pred_region
        %s131 = smul.u32 16, %s9
        %p132 = scmp.lt.s32.totalorder %s131, 63
        %s133 = scalar_select %p132, %s131, 63
        %s134 = smul.addr %s133, 2
        %s135 = smul.addr %s134, 4
        %s136 = scalar_lea.vmem %s0, %s135
        %s137 = smul.u32 16, %s9
      $region28: #{full_model_forward.4} parent=23 // pred_fallthru
        _
    $region24: #{full_model_forward.4} parent=5 // pred_fallthru
      _
    %p138 = scmp.le.s32.totalorder 1, %s9
    %p139 = scmp.lt.s32.totalorder %s9, 5
    %p140 = pnand %p138, %p139
    %p141 = pneg %p140
    // Predicated region
    $region29: #{full_model_forward.4} parent=5 // pred_check
      _
    $region30: #{full_model_forward.4} parent=5 // pred_check_branch
      %143 = sbr.rel (%p140) target = $region32
    $region31: #{full_model_forward.4} parent=5 // pred_region
      %s144 = ssub.s32 %s9, 1
      %s145 = smul.u32 16, %s14
      %p146 = scmp.lt.s32.totalorder %s145, 63
      %s147 = scalar_select %p146, %s145, 63
      %s148 = smul.addr %s147, 2
      %s149 = smul.addr %s148, 4
      %s150 = scalar_lea.vmem %s0, %s149
      %p151 = pneg %p35
      %p152 = pneg %p32
      %p153 = pneg %p56
      %p154 = pneg %p53
      %p155 = pneg %p77
      %p156 = pneg %p74
      %p157 = pneg %p103
      %p158 = pneg %p100
      %s159 = smul.u32 16, %s14
      %p160 = scmp.lt.s32.totalorder %s159, 63
      %s161 = scalar_select %p160, %s159, 63
      %s162 = smul.addr %s161, 8
      %s163 = scalar_lea.vmem %s3, %s162
      %s164 = smul.u32 16, %s14
      %p165 = scmp.lt.s32.totalorder %s164, 63
      %s166 = scalar_select %p165, %s164, 63
      %s167 = smul.addr %s166, 2
      %s168 = smul.addr %s167, 4
      %s169 = scalar_lea.vmem %s0, %s168
      %s170 = smul.u32 16, %s14
      %s171 = smul.u32 16, %s14
      %p172 = scmp.lt.s32.totalorder %s171, 63
      %s173 = scalar_select %p172, %s171, 63
      %s174 = smul.addr %s173, 8
      %s175 = scalar_lea.vmem %s3, %s174
      %s176 = smul.u32 16, %s14
      %v178 = vld [vmem:[%s169] sm:$0xff]
      %v179 = vld [vmem:[%s169 + $0x8] sm:$0xff]
      %v180 = vld [vmem:[%s169 + $0x10] sm:$0xff]
      %v181 = vld [vmem:[%s169 + $0x18] sm:$0xff]
      %v182 = vld [vmem:[%s169 + $0x20] sm:$0xff]
      %v183 = vld [vmem:[%s169 + $0x28] sm:$0xff]
      %v184 = vld [vmem:[%s169 + $0x30] sm:$0xff]
      %v185 = vld [vmem:[%s169 + $0x38] sm:$0xff]
      %v186 = vld [vmem:[%s169 + $0x40] sm:$0xff]
      %v187 = vld [vmem:[%s169 + $0x48] sm:$0xff]
      %v188 = vld [vmem:[%s169 + $0x50] sm:$0xff]
      %v189 = vld [vmem:[%s169 + $0x58] sm:$0xff]
      %v190 = vld [vmem:[%s169 + $0x60] sm:$0xff]
      %v191 = vld [vmem:[%s169 + $0x68] sm:$0xff]
      %v192 = vld [vmem:[%s169 + $0x70] sm:$0xff]
      %v193 = vld [vmem:[%s169 + $0x78] sm:$0xff]
      %v194 = vld [vmem:[%s1] sm:$0xf]
      %v195 = vld [vmem:[%s1 + $0x4] sm:$0xf]
      %v196 = vld [vmem:[%s1 + $0x8] sm:$0xf]
      %v197 = vld [vmem:[%s1 + $0xc] sm:$0xf]
      %v198 = vld [vmem:[%s1 + $0x10] sm:$0xf]
      %v199 = vld [vmem:[%s1 + $0x14] sm:$0xf]
      %v200 = vld [vmem:[%s1 + $0x18] sm:$0xf]
      %v201 = vld [vmem:[%s1 + $0x1c] sm:$0xf]
      %v202 = vld [vmem:[%s1 + $0x20] sm:$0xf]
      %v203 = vld [vmem:[%s1 + $0x24] sm:$0xf]
      %v204 = vld [vmem:[%s1 + $0x28] sm:$0xf]
      %v205 = vld [vmem:[%s1 + $0x2c] sm:$0xf]
      %v206 = vld [vmem:[%s1 + $0x30] sm:$0xf]
      %v207 = vld [vmem:[%s1 + $0x34] sm:$0xf]
      %v208 = vld [vmem:[%s1 + $0x38] sm:$0xf]
      %v209 = vld [vmem:[%s1 + $0x3c] sm:$0xf]
      %v210 = vld [vmem:[%s1 + $0x40] sm:$0xf]
      %v211 = vld [vmem:[%s1 + $0x44] sm:$0xf]
      %v212 = vld [vmem:[%s1 + $0x48] sm:$0xf]
      %v213 = vld [vmem:[%s1 + $0x4c] sm:$0xf]
      %v214 = vld [vmem:[%s1 + $0x50] sm:$0xf]
      %v215 = vld [vmem:[%s1 + $0x54] sm:$0xf]
      %v216 = vld [vmem:[%s1 + $0x58] sm:$0xf]
      %v217 = vld [vmem:[%s1 + $0x5c] sm:$0xf]
      %v218 = vld [vmem:[%s1 + $0x60] sm:$0xf]
      %v219 = vld [vmem:[%s1 + $0x64] sm:$0xf]
      %v220 = vld [vmem:[%s1 + $0x68] sm:$0xf]
      %v221 = vld [vmem:[%s1 + $0x6c] sm:$0xf]
      %v222 = vld [vmem:[%s1 + $0x70] sm:$0xf]
      %v223 = vld [vmem:[%s1 + $0x74] sm:$0xf]
      %v224 = vld [vmem:[%s1 + $0x78] sm:$0xf]
      %v225 = vld [vmem:[%s1 + $0x7c] sm:$0xf]
      %v226 = vld [vmem:[%s2] sm:$0x1]
      %v228 = vlaneseq
      %v229 = vshrl.u32 %v228, 7
      %v230 = vsub.s32 0, %v229
      %v231 = vrot.slane %v226, %v230
      %v249 = vunpack.c.l.b16 %v178
      %v250 = vunpack.c.h.b16 %v178
      %v251 = vunpack.c.l.b16 %v179
      %v252 = vunpack.c.h.b16 %v179
      %v253 = vunpack.c.l.b16 %v180
      %v254 = vunpack.c.h.b16 %v180
      %v255 = vunpack.c.l.b16 %v181
      %v256 = vunpack.c.h.b16 %v181
      %v257 = vunpack.c.l.b16 %v182
      %v258 = vunpack.c.h.b16 %v182
      %v259 = vunpack.c.l.b16 %v183
      %v260 = vunpack.c.h.b16 %v183
      %v261 = vunpack.c.l.b16 %v184
      %v262 = vunpack.c.h.b16 %v184
      %v263 = vunpack.c.l.b16 %v185
      %v264 = vunpack.c.h.b16 %v185
      %v265 = vunpack.c.l.b16 %v186
      %v266 = vunpack.c.h.b16 %v186
      %v267 = vunpack.c.l.b16 %v187
      %v268 = vunpack.c.h.b16 %v187
      %v269 = vunpack.c.l.b16 %v188
      %v270 = vunpack.c.h.b16 %v188
      %v271 = vunpack.c.l.b16 %v189
      %v272 = vunpack.c.h.b16 %v189
      %v273 = vunpack.c.l.b16 %v190
      %v274 = vunpack.c.h.b16 %v190
      %v275 = vunpack.c.l.b16 %v191
      %v276 = vunpack.c.h.b16 %v191
      %v277 = vunpack.c.l.b16 %v192
      %v278 = vunpack.c.h.b16 %v192
      %v279 = vunpack.c.l.b16 %v193
      %v280 = vunpack.c.h.b16 %v193
      %v281 = vpack.c.b16 %v251, %v249
      %v282 = vpack.c.b16 %v252, %v250
      %v283 = vpack.c.b16 %v255, %v253
      %v284 = vpack.c.b16 %v256, %v254
      %v285 = vpack.c.b16 %v259, %v257
      %v286 = vpack.c.b16 %v260, %v258
      %v287 = vpack.c.b16 %v263, %v261
      %v288 = vpack.c.b16 %v264, %v262
      %v289 = vpack.c.b16 %v267, %v265
      %v290 = vpack.c.b16 %v268, %v266
      %v291 = vpack.c.b16 %v271, %v269
      %v292 = vpack.c.b16 %v272, %v270
      %v293 = vpack.c.b16 %v275, %v273
      %v294 = vpack.c.b16 %v276, %v274
      %v295 = vpack.c.b16 %v279, %v277
      %v296 = vpack.c.b16 %v280, %v278
      %v345 = vunpack.c.l.b16 %v194
      %v346 = vunpack.c.l.b16 %v195
      %v347 = vunpack.c.l.b16 %v196
      %v348 = vunpack.c.l.b16 %v197
      %v349 = vunpack.c.l.b16 %v198
      %v350 = vunpack.c.l.b16 %v199
      %v351 = vunpack.c.l.b16 %v200
      %v352 = vunpack.c.l.b16 %v201
      %v353 = vunpack.c.l.b16 %v202
      %v354 = vunpack.c.l.b16 %v203
      %v355 = vunpack.c.l.b16 %v204
      %v356 = vunpack.c.l.b16 %v205
      %v357 = vunpack.c.l.b16 %v206
      %v358 = vunpack.c.l.b16 %v207
      %v359 = vunpack.c.l.b16 %v208
      %v360 = vunpack.c.l.b16 %v209
      %v361 = vunpack.c.l.b16 %v210
      %v362 = vunpack.c.l.b16 %v211
      %v363 = vunpack.c.l.b16 %v212
      %v364 = vunpack.c.l.b16 %v213
      %v365 = vunpack.c.l.b16 %v214
      %v366 = vunpack.c.l.b16 %v215
      %v367 = vunpack.c.l.b16 %v216
      %v368 = vunpack.c.l.b16 %v217
      %v369 = vunpack.c.l.b16 %v218
      %v370 = vunpack.c.l.b16 %v219
      %v371 = vunpack.c.l.b16 %v220
      %v372 = vunpack.c.l.b16 %v221
      %v373 = vunpack.c.l.b16 %v222
      %v374 = vunpack.c.l.b16 %v223
      %v375 = vunpack.c.l.b16 %v224
      %v376 = vunpack.c.l.b16 %v225
      %v377 = vpack.c.b16 %v346, %v345
      %v378 = vpack.c.b16 %v348, %v347
      %v379 = vpack.c.b16 %v350, %v349
      %v380 = vpack.c.b16 %v352, %v351
      %v381 = vpack.c.b16 %v354, %v353
      %v382 = vpack.c.b16 %v356, %v355
      %v383 = vpack.c.b16 %v358, %v357
      %v384 = vpack.c.b16 %v360, %v359
      %v385 = vpack.c.b16 %v362, %v361
      %v386 = vpack.c.b16 %v364, %v363
      %v387 = vpack.c.b16 %v366, %v365
      %v388 = vpack.c.b16 %v368, %v367
      %v389 = vpack.c.b16 %v370, %v369
      %v390 = vpack.c.b16 %v372, %v371
      %v391 = vpack.c.b16 %v374, %v373
      %v392 = vpack.c.b16 %v376, %v375
      %409 = vmatprep.subr.bf16.mxu0 0
      %410 = vmatpush1.bf16.msra.mxu0 %v384
      %411 = vmatprep.subr.bf16.mxu0 0
      %412 = vmatpush1.bf16.msra.mxu0 %v383
      %413 = vmatprep.subr.bf16.mxu0 0
      %414 = vmatpush1.bf16.msra.mxu0 %v382
      %415 = vmatprep.subr.bf16.mxu0 0
      %416 = vmatpush1.bf16.msra.mxu0 %v381
      %417 = vmatprep.subr.bf16.mxu0 0
      %418 = vmatpush1.bf16.msra.mxu0 %v380
      %419 = vmatprep.subr.bf16.mxu0 0
      %420 = vmatpush1.bf16.msra.mxu0 %v379
      %421 = vmatprep.subr.bf16.mxu0 0
      %422 = vmatpush1.bf16.msra.mxu0 %v378
      %423 = vmatprep.subr.bf16.mxu0 0
      %424 = vmatpush1.bf16.msra.mxu0 %v377
      %425 = vmatprep.subr.bf16.mxu0 0
      %426 = vmatpush2.bf16.msra.mxu0 %v392
      %427 = vmatprep.subr.bf16.mxu0 0
      %428 = vmatpush2.bf16.msra.mxu0 %v391
      %429 = vmatprep.subr.bf16.mxu0 0
      %430 = vmatpush2.bf16.msra.mxu0 %v390
      %431 = vmatprep.subr.bf16.mxu0 0
      %432 = vmatpush2.bf16.msra.mxu0 %v389
      %433 = vmatprep.subr.bf16.mxu0 0
      %434 = vmatpush2.bf16.msra.mxu0 %v388
      %435 = vmatprep.subr.bf16.mxu0 0
      %436 = vmatpush2.bf16.msra.mxu0 %v387
      %437 = vmatprep.subr.bf16.mxu0 0
      %438 = vmatpush2.bf16.msra.mxu0 %v386
      %439 = vmatprep.subr.bf16.mxu0 0
      %440 = vmatpush2.bf16.msra.mxu0 %v385
      %441 = vmatprep.mubr.bf16.mxu0 %v282
      %442 = vmatmul.mubr.bf16.gmra.mxu0 %v281
      %v443 = vpop.f32.mrf.mxu0
      %v444 = vadd.f32 %v231, %v443
      %v445 = vpop.f32.mrf.mxu0
      %v446 = vpop.f32.mrf.mxu0
      %v447 = vadd.f32 %v231, %v446
      %v448 = vpop.f32.mrf.mxu0
      %449 = vmatprep.mubr.bf16.mxu0 %v284
      %450 = vmatmul.mubr.bf16.gmra.mxu0 %v283
      %v451 = vpop.f32.mrf.mxu0
      %v452 = vadd.f32 %v231, %v451
      %v453 = vpop.f32.mrf.mxu0
      %v454 = vpop.f32.mrf.mxu0
      %v455 = vadd.f32 %v231, %v454
      %v456 = vpop.f32.mrf.mxu0
      %457 = vmatprep.mubr.bf16.mxu0 %v286
      %458 = vmatmul.mubr.bf16.gmra.mxu0 %v285
      %v459 = vpop.f32.mrf.mxu0
      %v460 = vadd.f32 %v231, %v459
      %v461 = vpop.f32.mrf.mxu0
      %v462 = vpop.f32.mrf.mxu0
      %v463 = vadd.f32 %v231, %v462
      %v464 = vpop.f32.mrf.mxu0
      %465 = vmatprep.mubr.bf16.mxu0 %v288
      %466 = vmatmul.mubr.bf16.gmra.mxu0 %v287
      %v467 = vpop.f32.mrf.mxu0
      %v468 = vadd.f32 %v231, %v467
      %v469 = vpop.f32.mrf.mxu0
      %v470 = vpop.f32.mrf.mxu0
      %v471 = vadd.f32 %v231, %v470
      %v472 = vpop.f32.mrf.mxu0
      %473 = vmatprep.mubr.bf16.mxu0 %v290
      %474 = vmatmul.mubr.bf16.gmra.mxu0 %v289
      %v475 = vpop.f32.mrf.mxu0
      %v476 = vadd.f32 %v231, %v475
      %v477 = vpop.f32.mrf.mxu0
      %v478 = vpop.f32.mrf.mxu0
      %v479 = vadd.f32 %v231, %v478
      %v480 = vpop.f32.mrf.mxu0
      %481 = vmatprep.mubr.bf16.mxu0 %v292
      %482 = vmatmul.mubr.bf16.gmra.mxu0 %v291
      %v483 = vpop.f32.mrf.mxu0
      %v484 = vadd.f32 %v231, %v483
      %v485 = vpop.f32.mrf.mxu0
      %v486 = vpop.f32.mrf.mxu0
      %v487 = vadd.f32 %v231, %v486
      %v488 = vpop.f32.mrf.mxu0
      %489 = vmatprep.mubr.bf16.mxu0 %v294
      %490 = vmatmul.mubr.bf16.gmra.mxu0 %v293
      %v491 = vpop.f32.mrf.mxu0
      %v492 = vadd.f32 %v231, %v491
      %v493 = vpop.f32.mrf.mxu0
      %v494 = vpop.f32.mrf.mxu0
      %v495 = vadd.f32 %v231, %v494
      %v496 = vpop.f32.mrf.mxu0
      %497 = vmatprep.mubr.bf16.mxu0 %v296
      %498 = vmatmul.mubr.bf16.gmra.mxu0 %v295
      %v499 = vpop.f32.mrf.mxu0
      %v500 = vadd.f32 %v231, %v499
      %v501 = vpop.f32.mrf.mxu0
      %v502 = vpop.f32.mrf.mxu0
      %v503 = vadd.f32 %v231, %v502
      %v504 = vpop.f32.mrf.mxu0
      %505 = vdwg.mxu0
      %v506 = vmax.f32 %v444, 0.0
      %v507 = vmax.f32 %v447, 0.0
      %v508 = vmax.f32 %v452, 0.0
      %v509 = vmax.f32 %v455, 0.0
      %v510 = vmax.f32 %v460, 0.0
      %v511 = vmax.f32 %v463, 0.0
      %v512 = vmax.f32 %v468, 0.0
      %v513 = vmax.f32 %v471, 0.0
      %v514 = vmax.f32 %v476, 0.0
      %v515 = vmax.f32 %v479, 0.0
      %v516 = vmax.f32 %v484, 0.0
      %v517 = vmax.f32 %v487, 0.0
      %v518 = vmax.f32 %v492, 0.0
      %v519 = vmax.f32 %v495, 0.0
      %v520 = vmax.f32 %v500, 0.0
      %v521 = vmax.f32 %v503, 0.0
      %522 = vst [vmem:[%s175] sm:$0xff] %v506
      %523 = vst [vmem:[%s175 + $0x8] sm:$0xff] %v507
      %524 = vst [vmem:[%s175 + $0x10] sm:$0xff] %v508
      %525 = vst [vmem:[%s175 + $0x18] sm:$0xff] %v509
      %526 = vst [vmem:[%s175 + $0x20] sm:$0xff] %v510
      %527 = vst [vmem:[%s175 + $0x28] sm:$0xff] %v511
      %528 = vst [vmem:[%s175 + $0x30] sm:$0xff] %v512
      %529 = vst [vmem:[%s175 + $0x38] sm:$0xff] %v513
      %530 = vst [vmem:[%s175 + $0x40] sm:$0xff] %v514
      %531 = vst [vmem:[%s175 + $0x48] sm:$0xff] %v515
      %532 = vst [vmem:[%s175 + $0x50] sm:$0xff] %v516
      %533 = vst [vmem:[%s175 + $0x58] sm:$0xff] %v517
      %534 = vst [vmem:[%s175 + $0x60] sm:$0xff] %v518
      %535 = vst [vmem:[%s175 + $0x68] sm:$0xff] %v519
      %536 = vst [vmem:[%s175 + $0x70] sm:$0xff] %v520
      %537 = vst [vmem:[%s175 + $0x78] sm:$0xff] %v521
      %s538 = smul.u32 16, %s14
      %p539 = scmp.lt.s32.totalorder %s538, 63
      %s540 = scalar_select %p539, %s538, 63
      %s541 = smul.addr %s540, 8
      %s542 = scalar_lea.vmem %s3, %s541
      // Predicated region
      $region33: #{full_model_forward.4} parent=31 // pred_check
        %p543 = pneg %p100
      $region34: #{full_model_forward.4} parent=31 // pred_check_branch
        %545 = sbr.rel (%p543) target = $region36
      $region35: #{full_model_forward.4} parent=31 // pred_region
        %s546 = smul.u32 16, %s14
      $region36: #{full_model_forward.4} parent=31 // pred_fallthru
        _
    $region32: #{full_model_forward.4} parent=5 // pred_fallthru
      _
    %p547 = scmp.le.s32.totalorder 2, %s9
    // Predicated region
    $region37: #{full_model_forward.4} parent=5 // pred_check
      %p548 = pneg %p547
    $region38: #{full_model_forward.4} parent=5 // pred_check_branch
      %550 = sbr.rel (%p548) target = $region40
    $region39: #{full_model_forward.4} parent=5 // pred_region
      %s551 = ssub.s32 %s9, 2
      // Predicated region
      $region41: #{full_model_forward.4} parent=39 // pred_check
        %p552 = pneg %p106
      $region42: #{full_model_forward.4} parent=39 // pred_check_branch
        %554 = sbr.rel (%p552) target = $region44
      $region43: #{full_model_forward.4} parent=39 // pred_region
        %s555 = smul.u32 16, %s15
        %p556 = scmp.lt.s32.totalorder %s555, 63
        %s557 = scalar_select %p556, %s555, 63
        %s558 = smul.addr %s557, 8
        %s559 = scalar_lea.vmem %s3, %s558
      $region44: #{full_model_forward.4} parent=39 // pred_fallthru
        _
    $region40: #{full_model_forward.4} parent=5 // pred_fallthru
      _
  $region6: #{full_model_forward.4} parent=0 // loop_footer
    %s13 = sadd.s32 1, %s9
  $region7: #{full_model_forward.4} parent=0 // loop_footer_branch
    %8 = sbr.rel target = $region3
  $region8: #{full_model_forward.4} parent=0 // loop_exit
    _

// kernel: full_model_forward.5
$region0: #{full_model_forward.5}
  #allocation0 [shape = 'u32[]', space=smem, size = 0x4, offset = 0x4, fixed_abs, tag = 'smem constant byte address 0x4 - core index']
  #allocation1 [shape = 'u32[144,128]{1,0:T(1,128)}', space=vmem, size = 0x12000, scoped, tag = 'internal scratch']
  %s0 = inlined_call_operand.vmem [shape: bf16[80,512], index: 0, kind: input, shape index: {}]
  %s1 = inlined_call_operand.vmem [shape: bf16[512,128], index: 1, kind: input, shape index: {}]
  %s2 = inlined_call_operand.vmem [shape: f32[1,128], index: 2, kind: input, shape index: {}]
  %s3 = inlined_call_operand.vmem [shape: f32[80,128], index: 3, kind: output, shape index: {}]
  %s4 = sld [smem:[#allocation0]]
  $region22: #{full_model_forward.5} parent=0
    _
  %s6 = ssub.s32 1, %s4
  %s7 = scalar_select 0, %s6, %s4
  // Predicated region
  $region2: #{full_model_forward.5} parent=0 // pred_check
    _
  $region3: #{full_model_forward.5} parent=0 // pred_check_branch
    %9 = sbr.rel (0) target = $region5
  $region4: #{full_model_forward.5} parent=0 // pred_region
    _
  $region5: #{full_model_forward.5} parent=0 // pred_fallthru
    _
  // Predicated region
  $region6: #{full_model_forward.5} parent=0 // pred_check
    _
  $region7: #{full_model_forward.5} parent=0 // pred_check_branch
    %11 = sbr.rel (0) target = $region9
  $region8: #{full_model_forward.5} parent=0 // pred_region
    _
  $region9: #{full_model_forward.5} parent=0 // pred_fallthru
    _
  // Predicated region
  $region10: #{full_model_forward.5} parent=0 // pred_check
    _
  $region11: #{full_model_forward.5} parent=0 // pred_check_branch
    %13 = sbr.rel (0) target = $region13
  $region12: #{full_model_forward.5} parent=0 // pred_region
    _
  $region13: #{full_model_forward.5} parent=0 // pred_fallthru
    _
  %v15 = vld [vmem:[%s0] sm:$0xff]
  %v16 = vld [vmem:[%s0 + $0x8] sm:$0xff]
  %v17 = vld [vmem:[%s0 + $0x10] sm:$0xff]
  %v18 = vld [vmem:[%s0 + $0x18] sm:$0xff]
  %v19 = vld [vmem:[%s0 + $0x20] sm:$0xff]
  %v20 = vld [vmem:[%s0 + $0x28] sm:$0xff]
  %v21 = vld [vmem:[%s0 + $0x30] sm:$0xff]
  %v22 = vld [vmem:[%s0 + $0x38] sm:$0xff]
  %v23 = vld [vmem:[%s0 + $0x40] sm:$0xff]
  %v24 = vld [vmem:[%s0 + $0x48] sm:$0xff]
  %v25 = vld [vmem:[%s0 + $0x50] sm:$0xff]
  %v26 = vld [vmem:[%s0 + $0x58] sm:$0xff]
  %v27 = vld [vmem:[%s0 + $0x60] sm:$0xff]
  %v28 = vld [vmem:[%s0 + $0x68] sm:$0xff]
  %v29 = vld [vmem:[%s0 + $0x70] sm:$0xff]
  %v30 = vld [vmem:[%s0 + $0x78] sm:$0xff]
  %v31 = vld [vmem:[%s0 + $0x80] sm:$0xff]
  %v32 = vld [vmem:[%s0 + $0x88] sm:$0xff]
  %v33 = vld [vmem:[%s0 + $0x90] sm:$0xff]
  %v34 = vld [vmem:[%s0 + $0x98] sm:$0xff]
  %v35 = vld [vmem:[%s1] sm:$0xf]
  %v36 = vld [vmem:[%s1 + $0x4] sm:$0xf]
  %v37 = vld [vmem:[%s1 + $0x8] sm:$0xf]
  %v38 = vld [vmem:[%s1 + $0xc] sm:$0xf]
  %v39 = vld [vmem:[%s1 + $0x10] sm:$0xf]
  %v40 = vld [vmem:[%s1 + $0x14] sm:$0xf]
  %v41 = vld [vmem:[%s1 + $0x18] sm:$0xf]
  %v42 = vld [vmem:[%s1 + $0x1c] sm:$0xf]
  %v43 = vld [vmem:[%s1 + $0x20] sm:$0xf]
  %v44 = vld [vmem:[%s1 + $0x24] sm:$0xf]
  %v45 = vld [vmem:[%s1 + $0x28] sm:$0xf]
  %v46 = vld [vmem:[%s1 + $0x2c] sm:$0xf]
  %v47 = vld [vmem:[%s1 + $0x30] sm:$0xf]
  %v48 = vld [vmem:[%s1 + $0x34] sm:$0xf]
  %v49 = vld [vmem:[%s1 + $0x38] sm:$0xf]
  %v50 = vld [vmem:[%s1 + $0x3c] sm:$0xf]
  %v51 = vld [vmem:[%s1 + $0x40] sm:$0xf]
  %v52 = vld [vmem:[%s1 + $0x44] sm:$0xf]
  %v53 = vld [vmem:[%s1 + $0x48] sm:$0xf]
  %v54 = vld [vmem:[%s1 + $0x4c] sm:$0xf]
  %v55 = vld [vmem:[%s1 + $0x50] sm:$0xf]
  %v56 = vld [vmem:[%s1 + $0x54] sm:$0xf]
  %v57 = vld [vmem:[%s1 + $0x58] sm:$0xf]
  %v58 = vld [vmem:[%s1 + $0x5c] sm:$0xf]
  %v59 = vld [vmem:[%s1 + $0x60] sm:$0xf]
  %v60 = vld [vmem:[%s1 + $0x64] sm:$0xf]
  %v61 = vld [vmem:[%s1 + $0x68] sm:$0xf]
  %v62 = vld [vmem:[%s1 + $0x6c] sm:$0xf]
  %v63 = vld [vmem:[%s1 + $0x70] sm:$0xf]
  %v64 = vld [vmem:[%s1 + $0x74] sm:$0xf]
  %v65 = vld [vmem:[%s1 + $0x78] sm:$0xf]
  %v66 = vld [vmem:[%s1 + $0x7c] sm:$0xf]
  %v67 = vld [vmem:[%s1 + $0x80] sm:$0xf]
  %v68 = vld [vmem:[%s1 + $0x84] sm:$0xf]
  %v69 = vld [vmem:[%s1 + $0x88] sm:$0xf]
  %v70 = vld [vmem:[%s1 + $0x8c] sm:$0xf]
  %v71 = vld [vmem:[%s1 + $0x90] sm:$0xf]
  %v72 = vld [vmem:[%s1 + $0x94] sm:$0xf]
  %v73 = vld [vmem:[%s1 + $0x98] sm:$0xf]
  %v74 = vld [vmem:[%s1 + $0x9c] sm:$0xf]
  %v75 = vld [vmem:[%s1 + $0xa0] sm:$0xf]
  %v76 = vld [vmem:[%s1 + $0xa4] sm:$0xf]
  %v77 = vld [vmem:[%s1 + $0xa8] sm:$0xf]
  %v78 = vld [vmem:[%s1 + $0xac] sm:$0xf]
  %v79 = vld [vmem:[%s1 + $0xb0] sm:$0xf]
  %v80 = vld [vmem:[%s1 + $0xb4] sm:$0xf]
  %v81 = vld [vmem:[%s1 + $0xb8] sm:$0xf]
  %v82 = vld [vmem:[%s1 + $0xbc] sm:$0xf]
  %v83 = vld [vmem:[%s1 + $0xc0] sm:$0xf]
  %v84 = vld [vmem:[%s1 + $0xc4] sm:$0xf]
  %v85 = vld [vmem:[%s1 + $0xc8] sm:$0xf]
  %v86 = vld [vmem:[%s1 + $0xcc] sm:$0xf]
  %v87 = vld [vmem:[%s1 + $0xd0] sm:$0xf]
  %v88 = vld [vmem:[%s1 + $0xd4] sm:$0xf]
  %v89 = vld [vmem:[%s1 + $0xd8] sm:$0xf]
  %v90 = vld [vmem:[%s1 + $0xdc] sm:$0xf]
  %v91 = vld [vmem:[%s1 + $0xe0] sm:$0xf]
  %v92 = vld [vmem:[%s1 + $0xe4] sm:$0xf]
  %v93 = vld [vmem:[%s1 + $0xe8] sm:$0xf]
  %v94 = vld [vmem:[%s1 + $0xec] sm:$0xf]
  %v95 = vld [vmem:[%s1 + $0xf0] sm:$0xf]
  %v96 = vld [vmem:[%s1 + $0xf4] sm:$0xf]
  %v97 = vld [vmem:[%s1 + $0xf8] sm:$0xf]
  %v98 = vld [vmem:[%s1 + $0xfc] sm:$0xf]
  %v99 = vld [vmem:[%s2] sm:$0x1]
  %v101 = vlaneseq
  %v102 = vshrl.u32 %v101, 7
  %v103 = vsub.s32 0, %v102
  %v104 = vrot.slane %v99, %v103
  %v126 = vunpack.c.l.b16 %v15
  %v127 = vunpack.c.h.b16 %v15
  %v128 = vunpack.c.l.b16 %v16
  %v129 = vunpack.c.h.b16 %v16
  %v130 = vunpack.c.l.b16 %v17
  %v131 = vunpack.c.h.b16 %v17
  %v132 = vunpack.c.l.b16 %v18
  %v133 = vunpack.c.h.b16 %v18
  %v134 = vunpack.c.l.b16 %v19
  %v135 = vunpack.c.h.b16 %v19
  %v136 = vunpack.c.l.b16 %v20
  %v137 = vunpack.c.h.b16 %v20
  %v138 = vunpack.c.l.b16 %v21
  %v139 = vunpack.c.h.b16 %v21
  %v140 = vunpack.c.l.b16 %v22
  %v141 = vunpack.c.h.b16 %v22
  %v142 = vunpack.c.l.b16 %v23
  %v143 = vunpack.c.h.b16 %v23
  %v144 = vunpack.c.l.b16 %v24
  %v145 = vunpack.c.h.b16 %v24
  %v146 = vunpack.c.l.b16 %v25
  %v147 = vunpack.c.h.b16 %v25
  %v148 = vunpack.c.l.b16 %v26
  %v149 = vunpack.c.h.b16 %v26
  %v150 = vunpack.c.l.b16 %v27
  %v151 = vunpack.c.h.b16 %v27
  %v152 = vunpack.c.l.b16 %v28
  %v153 = vunpack.c.h.b16 %v28
  %v154 = vunpack.c.l.b16 %v29
  %v155 = vunpack.c.h.b16 %v29
  %v156 = vunpack.c.l.b16 %v30
  %v157 = vunpack.c.h.b16 %v30
  %v158 = vunpack.c.l.b16 %v31
  %v159 = vunpack.c.h.b16 %v31
  %v160 = vunpack.c.l.b16 %v32
  %v161 = vunpack.c.h.b16 %v32
  %v162 = vunpack.c.l.b16 %v33
  %v163 = vunpack.c.h.b16 %v33
  %v164 = vunpack.c.l.b16 %v34
  %v165 = vunpack.c.h.b16 %v34
  %v166 = vpack.c.b16 %v130, %v126
  %v167 = vpack.c.b16 %v131, %v127
  %v168 = vpack.c.b16 %v132, %v128
  %v169 = vpack.c.b16 %v133, %v129
  %v170 = vpack.c.b16 %v138, %v134
  %v171 = vpack.c.b16 %v139, %v135
  %v172 = vpack.c.b16 %v140, %v136
  %v173 = vpack.c.b16 %v141, %v137
  %v174 = vpack.c.b16 %v146, %v142
  %v175 = vpack.c.b16 %v147, %v143
  %v176 = vpack.c.b16 %v148, %v144
  %v177 = vpack.c.b16 %v149, %v145
  %v178 = vpack.c.b16 %v154, %v150
  %v179 = vpack.c.b16 %v155, %v151
  %v180 = vpack.c.b16 %v156, %v152
  %v181 = vpack.c.b16 %v157, %v153
  %v182 = vpack.c.b16 %v162, %v158
  %v183 = vpack.c.b16 %v163, %v159
  %v184 = vpack.c.b16 %v164, %v160
  %v185 = vpack.c.b16 %v165, %v161
  %v270 = vunpack.c.l.b16 %v35
  %v271 = vunpack.c.l.b16 %v36
  %v272 = vunpack.c.l.b16 %v37
  %v273 = vunpack.c.l.b16 %v38
  %v274 = vunpack.c.l.b16 %v39
  %v275 = vunpack.c.l.b16 %v40
  %v276 = vunpack.c.l.b16 %v41
  %v277 = vunpack.c.l.b16 %v42
  %v278 = vunpack.c.l.b16 %v43
  %v279 = vunpack.c.l.b16 %v44
  %v280 = vunpack.c.l.b16 %v45
  %v281 = vunpack.c.l.b16 %v46
  %v282 = vunpack.c.l.b16 %v47
  %v283 = vunpack.c.l.b16 %v48
  %v284 = vunpack.c.l.b16 %v49
  %v285 = vunpack.c.l.b16 %v50
  %v286 = vunpack.c.l.b16 %v51
  %v287 = vunpack.c.l.b16 %v52
  %v288 = vunpack.c.l.b16 %v53
  %v289 = vunpack.c.l.b16 %v54
  %v290 = vunpack.c.l.b16 %v55
  %v291 = vunpack.c.l.b16 %v56
  %v292 = vunpack.c.l.b16 %v57
  %v293 = vunpack.c.l.b16 %v58
  %v294 = vunpack.c.l.b16 %v59
  %v295 = vunpack.c.l.b16 %v60
  %v296 = vunpack.c.l.b16 %v61
  %v297 = vunpack.c.l.b16 %v62
  %v298 = vunpack.c.l.b16 %v63
  %v299 = vunpack.c.l.b16 %v64
  %v300 = vunpack.c.l.b16 %v65
  %v301 = vunpack.c.l.b16 %v66
  %v302 = vunpack.c.l.b16 %v67
  %v303 = vunpack.c.l.b16 %v68
  %v304 = vunpack.c.l.b16 %v69
  %v305 = vunpack.c.l.b16 %v70
  %v306 = vunpack.c.l.b16 %v71
  %v307 = vunpack.c.l.b16 %v72
  %v308 = vunpack.c.l.b16 %v73
  %v309 = vunpack.c.l.b16 %v74
  %v310 = vunpack.c.l.b16 %v75
  %v311 = vunpack.c.l.b16 %v76
  %v312 = vunpack.c.l.b16 %v77
  %v313 = vunpack.c.l.b16 %v78
  %v314 = vunpack.c.l.b16 %v79
  %v315 = vunpack.c.l.b16 %v80
  %v316 = vunpack.c.l.b16 %v81
  %v317 = vunpack.c.l.b16 %v82
  %v318 = vunpack.c.l.b16 %v83
  %v319 = vunpack.c.l.b16 %v84
  %v320 = vunpack.c.l.b16 %v85
  %v321 = vunpack.c.l.b16 %v86
  %v322 = vunpack.c.l.b16 %v87
  %v323 = vunpack.c.l.b16 %v88
  %v324 = vunpack.c.l.b16 %v89
  %v325 = vunpack.c.l.b16 %v90
  %v326 = vunpack.c.l.b16 %v91
  %v327 = vunpack.c.l.b16 %v92
  %v328 = vunpack.c.l.b16 %v93
  %v329 = vunpack.c.l.b16 %v94
  %v330 = vunpack.c.l.b16 %v95
  %v331 = vunpack.c.l.b16 %v96
  %v332 = vunpack.c.l.b16 %v97
  %v333 = vunpack.c.l.b16 %v98
  %v334 = vpack.c.b16 %v271, %v270
  %v335 = vpack.c.b16 %v273, %v272
  %v336 = vpack.c.b16 %v275, %v274
  %v337 = vpack.c.b16 %v277, %v276
  %v338 = vpack.c.b16 %v279, %v278
  %v339 = vpack.c.b16 %v281, %v280
  %v340 = vpack.c.b16 %v283, %v282
  %v341 = vpack.c.b16 %v285, %v284
  %v342 = vpack.c.b16 %v287, %v286
  %v343 = vpack.c.b16 %v289, %v288
  %v344 = vpack.c.b16 %v291, %v290
  %v345 = vpack.c.b16 %v293, %v292
  %v346 = vpack.c.b16 %v295, %v294
  %v347 = vpack.c.b16 %v297, %v296
  %v348 = vpack.c.b16 %v299, %v298
  %v349 = vpack.c.b16 %v301, %v300
  %v350 = vpack.c.b16 %v303, %v302
  %v351 = vpack.c.b16 %v305, %v304
  %v352 = vpack.c.b16 %v307, %v306
  %v353 = vpack.c.b16 %v309, %v308
  %v354 = vpack.c.b16 %v311, %v310
  %v355 = vpack.c.b16 %v313, %v312
  %v356 = vpack.c.b16 %v315, %v314
  %v357 = vpack.c.b16 %v317, %v316
  %v358 = vpack.c.b16 %v319, %v318
  %v359 = vpack.c.b16 %v321, %v320
  %v360 = vpack.c.b16 %v323, %v322
  %v361 = vpack.c.b16 %v325, %v324
  %v362 = vpack.c.b16 %v327, %v326
  %v363 = vpack.c.b16 %v329, %v328
  %v364 = vpack.c.b16 %v331, %v330
  %v365 = vpack.c.b16 %v333, %v332
  %398 = vmatprep.subr.bf16.mxu0 0
  %399 = vmatpush1.bf16.msra.mxu0 %v341
  %400 = vmatprep.subr.bf16.mxu0 0
  %401 = vmatpush1.bf16.msra.mxu0 %v340
  %402 = vmatprep.subr.bf16.mxu0 0
  %403 = vmatpush1.bf16.msra.mxu0 %v339
  %404 = vmatprep.subr.bf16.mxu0 0
  %405 = vmatpush1.bf16.msra.mxu0 %v338
  %406 = vmatprep.subr.bf16.mxu0 0
  %407 = vmatpush1.bf16.msra.mxu0 %v337
  %408 = vmatprep.subr.bf16.mxu0 0
  %409 = vmatpush1.bf16.msra.mxu0 %v336
  %410 = vmatprep.subr.bf16.mxu0 0
  %411 = vmatpush1.bf16.msra.mxu0 %v335
  %412 = vmatprep.subr.bf16.mxu0 0
  %413 = vmatpush1.bf16.msra.mxu0 %v334
  %414 = vmatprep.subr.bf16.mxu0 0
  %415 = vmatpush2.bf16.msra.mxu0 %v349
  %416 = vmatprep.subr.bf16.mxu0 0
  %417 = vmatpush2.bf16.msra.mxu0 %v348
  %418 = vmatprep.subr.bf16.mxu0 0
  %419 = vmatpush2.bf16.msra.mxu0 %v347
  %420 = vmatprep.subr.bf16.mxu0 0
  %421 = vmatpush2.bf16.msra.mxu0 %v346
  %422 = vmatprep.subr.bf16.mxu0 0
  %423 = vmatpush2.bf16.msra.mxu0 %v345
  %424 = vmatprep.subr.bf16.mxu0 0
  %425 = vmatpush2.bf16.msra.mxu0 %v344
  %426 = vmatprep.subr.bf16.mxu0 0
  %427 = vmatpush2.bf16.msra.mxu0 %v343
  %428 = vmatprep.subr.bf16.mxu0 0
  %429 = vmatpush2.bf16.msra.mxu0 %v342
  %430 = vmatprep.mubr.bf16.mxu0 %v167
  %431 = vmatmul.mubr.bf16.gmra.mxu0 %v166
  %v432 = vpop.f32.mrf.mxu0
  %v433 = vadd.f32 %v104, %v432
  %v434 = vpop.f32.mrf.mxu0
  %v435 = vpop.f32.mrf.mxu0
  %v436 = vadd.f32 %v104, %v435
  %v437 = vpop.f32.mrf.mxu0
  %438 = vmatprep.mubr.bf16.mxu0 %v171
  %439 = vmatmul.mubr.bf16.gmra.mxu0 %v170
  %v440 = vpop.f32.mrf.mxu0
  %v441 = vadd.f32 %v104, %v440
  %v442 = vpop.f32.mrf.mxu0
  %v443 = vpop.f32.mrf.mxu0
  %v444 = vadd.f32 %v104, %v443
  %v445 = vpop.f32.mrf.mxu0
  %446 = vmatprep.mubr.bf16.mxu0 %v175
  %447 = vmatmul.mubr.bf16.gmra.mxu0 %v174
  %v448 = vpop.f32.mrf.mxu0
  %v449 = vadd.f32 %v104, %v448
  %v450 = vpop.f32.mrf.mxu0
  %v451 = vpop.f32.mrf.mxu0
  %v452 = vadd.f32 %v104, %v451
  %v453 = vpop.f32.mrf.mxu0
  %454 = vmatprep.mubr.bf16.mxu0 %v179
  %455 = vmatmul.mubr.bf16.gmra.mxu0 %v178
  %v456 = vpop.f32.mrf.mxu0
  %v457 = vadd.f32 %v104, %v456
  %v458 = vpop.f32.mrf.mxu0
  %v459 = vpop.f32.mrf.mxu0
  %v460 = vadd.f32 %v104, %v459
  %v461 = vpop.f32.mrf.mxu0
  %462 = vmatprep.mubr.bf16.mxu0 %v183
  %463 = vmatmul.mubr.bf16.gmra.mxu0 %v182
  %v464 = vpop.f32.mrf.mxu0
  %v465 = vadd.f32 %v104, %v464
  %v466 = vpop.f32.mrf.mxu0
  %v467 = vpop.f32.mrf.mxu0
  %v468 = vadd.f32 %v104, %v467
  %v469 = vpop.f32.mrf.mxu0
  %470 = vdwg.mxu0
  %471 = vmatprep.subr.bf16.mxu0 0
  %472 = vmatpush1.bf16.msra.mxu0 %v357
  %473 = vmatprep.subr.bf16.mxu0 0
  %474 = vmatpush1.bf16.msra.mxu0 %v356
  %475 = vmatprep.subr.bf16.mxu0 0
  %476 = vmatpush1.bf16.msra.mxu0 %v355
  %477 = vmatprep.subr.bf16.mxu0 0
  %478 = vmatpush1.bf16.msra.mxu0 %v354
  %479 = vmatprep.subr.bf16.mxu0 0
  %480 = vmatpush1.bf16.msra.mxu0 %v353
  %481 = vmatprep.subr.bf16.mxu0 0
  %482 = vmatpush1.bf16.msra.mxu0 %v352
  %483 = vmatprep.subr.bf16.mxu0 0
  %484 = vmatpush1.bf16.msra.mxu0 %v351
  %485 = vmatprep.subr.bf16.mxu0 0
  %486 = vmatpush1.bf16.msra.mxu0 %v350
  %487 = vmatprep.subr.bf16.mxu0 0
  %488 = vmatpush2.bf16.msra.mxu0 %v365
  %489 = vmatprep.subr.bf16.mxu0 0
  %490 = vmatpush2.bf16.msra.mxu0 %v364
  %491 = vmatprep.subr.bf16.mxu0 0
  %492 = vmatpush2.bf16.msra.mxu0 %v363
  %493 = vmatprep.subr.bf16.mxu0 0
  %494 = vmatpush2.bf16.msra.mxu0 %v362
  %495 = vmatprep.subr.bf16.mxu0 0
  %496 = vmatpush2.bf16.msra.mxu0 %v361
  %497 = vmatprep.subr.bf16.mxu0 0
  %498 = vmatpush2.bf16.msra.mxu0 %v360
  %499 = vmatprep.subr.bf16.mxu0 0
  %500 = vmatpush2.bf16.msra.mxu0 %v359
  %501 = vmatprep.subr.bf16.mxu0 0
  %502 = vmatpush2.bf16.msra.mxu0 %v358
  %503 = vmatprep.mubr.bf16.mxu0 %v169
  %504 = vmatmul.mubr.bf16.gmra.mxu0 %v168
  %v505 = vpop.f32.mrf.mxu0
  %v506 = vadd.f32 %v433, %v505
  %v507 = vpop.f32.mrf.mxu0
  %v508 = vpop.f32.mrf.mxu0
  %v509 = vadd.f32 %v436, %v508
  %v510 = vpop.f32.mrf.mxu0
  %511 = vmatprep.mubr.bf16.mxu0 %v173
  %512 = vmatmul.mubr.bf16.gmra.mxu0 %v172
  %v513 = vpop.f32.mrf.mxu0
  %v514 = vadd.f32 %v441, %v513
  %v515 = vpop.f32.mrf.mxu0
  %v516 = vpop.f32.mrf.mxu0
  %v517 = vadd.f32 %v444, %v516
  %v518 = vpop.f32.mrf.mxu0
  %519 = vmatprep.mubr.bf16.mxu0 %v177
  %520 = vmatmul.mubr.bf16.gmra.mxu0 %v176
  %v521 = vpop.f32.mrf.mxu0
  %v522 = vadd.f32 %v449, %v521
  %v523 = vpop.f32.mrf.mxu0
  %v524 = vpop.f32.mrf.mxu0
  %v525 = vadd.f32 %v452, %v524
  %v526 = vpop.f32.mrf.mxu0
  %527 = vmatprep.mubr.bf16.mxu0 %v181
  %528 = vmatmul.mubr.bf16.gmra.mxu0 %v180
  %v529 = vpop.f32.mrf.mxu0
  %v530 = vadd.f32 %v457, %v529
  %v531 = vpop.f32.mrf.mxu0
  %v532 = vpop.f32.mrf.mxu0
  %v533 = vadd.f32 %v460, %v532
  %v534 = vpop.f32.mrf.mxu0
  %535 = vmatprep.mubr.bf16.mxu0 %v185
  %536 = vmatmul.mubr.bf16.gmra.mxu0 %v184
  %v537 = vpop.f32.mrf.mxu0
  %v538 = vadd.f32 %v465, %v537
  %v539 = vpop.f32.mrf.mxu0
  %v540 = vpop.f32.mrf.mxu0
  %v541 = vadd.f32 %v468, %v540
  %v542 = vpop.f32.mrf.mxu0
  %543 = vdwg.mxu0
  %v544 = vmax.f32 %v506, 0.0
  %v545 = vmax.f32 %v509, 0.0
  %v546 = vmax.f32 %v514, 0.0
  %v547 = vmax.f32 %v517, 0.0
  %v548 = vmax.f32 %v522, 0.0
  %v549 = vmax.f32 %v525, 0.0
  %v550 = vmax.f32 %v530, 0.0
  %v551 = vmax.f32 %v533, 0.0
  %v552 = vmax.f32 %v538, 0.0
  %v553 = vmax.f32 %v541, 0.0
  %554 = vst [vmem:[%s3] sm:$0xff] %v544
  %555 = vst [vmem:[%s3 + $0x8] sm:$0xff] %v545
  %556 = vst [vmem:[%s3 + $0x10] sm:$0xff] %v546
  %557 = vst [vmem:[%s3 + $0x18] sm:$0xff] %v547
  %558 = vst [vmem:[%s3 + $0x20] sm:$0xff] %v548
  %559 = vst [vmem:[%s3 + $0x28] sm:$0xff] %v549
  %560 = vst [vmem:[%s3 + $0x30] sm:$0xff] %v550
  %561 = vst [vmem:[%s3 + $0x38] sm:$0xff] %v551
  %562 = vst [vmem:[%s3 + $0x40] sm:$0xff] %v552
  %563 = vst [vmem:[%s3 + $0x48] sm:$0xff] %v553
  // Predicated region
  $region14: #{full_model_forward.5} parent=0 // pred_check
    _
  $region15: #{full_model_forward.5} parent=0 // pred_check_branch
    %565 = sbr.rel (0) target = $region17
  $region16: #{full_model_forward.5} parent=0 // pred_region
    _
  $region17: #{full_model_forward.5} parent=0 // pred_fallthru
    _
  // Predicated region
  $region18: #{full_model_forward.5} parent=0 // pred_check
    _
  $region19: #{full_model_forward.5} parent=0 // pred_check_branch
    %567 = sbr.rel (0) target = $region21
  $region20: #{full_model_forward.5} parent=0 // pred_region
    _
  $region21: #{full_model_forward.5} parent=0 // pred_fallthru
    _

// kernel: full_model_forward.6
$region0: #{full_model_forward.6}
  #allocation0 [shape = 'u32[]', space=smem, size = 0x4, offset = 0x4, fixed_abs, tag = 'smem constant byte address 0x4 - core index']
  #allocation1 [shape = 'u32[144,128]{1,0:T(1,128)}', space=vmem, size = 0x12000, scoped, tag = 'internal scratch']
  %s0 = inlined_call_operand.vmem [shape: bf16[32,640], index: 0, kind: input, shape index: {}]
  %s1 = inlined_call_operand.vmem [shape: bf16[640,128], index: 1, kind: input, shape index: {}]
  %s2 = inlined_call_operand.vmem [shape: f32[1,128], index: 2, kind: input, shape index: {}]
  %s3 = inlined_call_operand.vmem [shape: f32[32,128], index: 3, kind: output, shape index: {}]
  %s4 = sld [smem:[#allocation0]]
  $region22: #{full_model_forward.6} parent=0
    _
  %s6 = ssub.s32 1, %s4
  %s7 = scalar_select 0, %s6, %s4
  // Predicated region
  $region2: #{full_model_forward.6} parent=0 // pred_check
    _
  $region3: #{full_model_forward.6} parent=0 // pred_check_branch
    %9 = sbr.rel (0) target = $region5
  $region4: #{full_model_forward.6} parent=0 // pred_region
    _
  $region5: #{full_model_forward.6} parent=0 // pred_fallthru
    _
  // Predicated region
  $region6: #{full_model_forward.6} parent=0 // pred_check
    _
  $region7: #{full_model_forward.6} parent=0 // pred_check_branch
    %11 = sbr.rel (0) target = $region9
  $region8: #{full_model_forward.6} parent=0 // pred_region
    _
  $region9: #{full_model_forward.6} parent=0 // pred_fallthru
    _
  // Predicated region
  $region10: #{full_model_forward.6} parent=0 // pred_check
    _
  $region11: #{full_model_forward.6} parent=0 // pred_check_branch
    %13 = sbr.rel (0) target = $region13
  $region12: #{full_model_forward.6} parent=0 // pred_region
    _
  $region13: #{full_model_forward.6} parent=0 // pred_fallthru
    _
  %v15 = vld [vmem:[%s0] sm:$0xff]
  %v16 = vld [vmem:[%s0 + $0x8] sm:$0xff]
  %v17 = vld [vmem:[%s0 + $0x10] sm:$0xf]
  %v18 = vld [vmem:[%s0 + $0x14] sm:$0xff]
  %v19 = vld [vmem:[%s0 + $0x1c] sm:$0xff]
  %v20 = vld [vmem:[%s0 + $0x24] sm:$0xf]
  %v21 = vld [vmem:[%s0 + $0x28] sm:$0xff]
  %v22 = vld [vmem:[%s0 + $0x30] sm:$0xff]
  %v23 = vld [vmem:[%s0 + $0x38] sm:$0xf]
  %v24 = vld [vmem:[%s0 + $0x3c] sm:$0xff]
  %v25 = vld [vmem:[%s0 + $0x44] sm:$0xff]
  %v26 = vld [vmem:[%s0 + $0x4c] sm:$0xf]
  %v27 = vld [vmem:[%s1] sm:$0xf]
  %v28 = vld [vmem:[%s1 + $0x4] sm:$0xf]
  %v29 = vld [vmem:[%s1 + $0x8] sm:$0xf]
  %v30 = vld [vmem:[%s1 + $0xc] sm:$0xf]
  %v31 = vld [vmem:[%s1 + $0x10] sm:$0xf]
  %v32 = vld [vmem:[%s1 + $0x14] sm:$0xf]
  %v33 = vld [vmem:[%s1 + $0x18] sm:$0xf]
  %v34 = vld [vmem:[%s1 + $0x1c] sm:$0xf]
  %v35 = vld [vmem:[%s1 + $0x20] sm:$0xf]
  %v36 = vld [vmem:[%s1 + $0x24] sm:$0xf]
  %v37 = vld [vmem:[%s1 + $0x28] sm:$0xf]
  %v38 = vld [vmem:[%s1 + $0x2c] sm:$0xf]
  %v39 = vld [vmem:[%s1 + $0x30] sm:$0xf]
  %v40 = vld [vmem:[%s1 + $0x34] sm:$0xf]
  %v41 = vld [vmem:[%s1 + $0x38] sm:$0xf]
  %v42 = vld [vmem:[%s1 + $0x3c] sm:$0xf]
  %v43 = vld [vmem:[%s1 + $0x40] sm:$0xf]
  %v44 = vld [vmem:[%s1 + $0x44] sm:$0xf]
  %v45 = vld [vmem:[%s1 + $0x48] sm:$0xf]
  %v46 = vld [vmem:[%s1 + $0x4c] sm:$0xf]
  %v47 = vld [vmem:[%s1 + $0x50] sm:$0xf]
  %v48 = vld [vmem:[%s1 + $0x54] sm:$0xf]
  %v49 = vld [vmem:[%s1 + $0x58] sm:$0xf]
  %v50 = vld [vmem:[%s1 + $0x5c] sm:$0xf]
  %v51 = vld [vmem:[%s1 + $0x60] sm:$0xf]
  %v52 = vld [vmem:[%s1 + $0x64] sm:$0xf]
  %v53 = vld [vmem:[%s1 + $0x68] sm:$0xf]
  %v54 = vld [vmem:[%s1 + $0x6c] sm:$0xf]
  %v55 = vld [vmem:[%s1 + $0x70] sm:$0xf]
  %v56 = vld [vmem:[%s1 + $0x74] sm:$0xf]
  %v57 = vld [vmem:[%s1 + $0x78] sm:$0xf]
  %v58 = vld [vmem:[%s1 + $0x7c] sm:$0xf]
  %v59 = vld [vmem:[%s1 + $0x80] sm:$0xf]
  %v60 = vld [vmem:[%s1 + $0x84] sm:$0xf]
  %v61 = vld [vmem:[%s1 + $0x88] sm:$0xf]
  %v62 = vld [vmem:[%s1 + $0x8c] sm:$0xf]
  %v63 = vld [vmem:[%s1 + $0x90] sm:$0xf]
  %v64 = vld [vmem:[%s1 + $0x94] sm:$0xf]
  %v65 = vld [vmem:[%s1 + $0x98] sm:$0xf]
  %v66 = vld [vmem:[%s1 + $0x9c] sm:$0xf]
  %v67 = vld [vmem:[%s1 + $0xa0] sm:$0xf]
  %v68 = vld [vmem:[%s1 + $0xa4] sm:$0xf]
  %v69 = vld [vmem:[%s1 + $0xa8] sm:$0xf]
  %v70 = vld [vmem:[%s1 + $0xac] sm:$0xf]
  %v71 = vld [vmem:[%s1 + $0xb0] sm:$0xf]
  %v72 = vld [vmem:[%s1 + $0xb4] sm:$0xf]
  %v73 = vld [vmem:[%s1 + $0xb8] sm:$0xf]
  %v74 = vld [vmem:[%s1 + $0xbc] sm:$0xf]
  %v75 = vld [vmem:[%s1 + $0xc0] sm:$0xf]
  %v76 = vld [vmem:[%s1 + $0xc4] sm:$0xf]
  %v77 = vld [vmem:[%s1 + $0xc8] sm:$0xf]
  %v78 = vld [vmem:[%s1 + $0xcc] sm:$0xf]
  %v79 = vld [vmem:[%s1 + $0xd0] sm:$0xf]
  %v80 = vld [vmem:[%s1 + $0xd4] sm:$0xf]
  %v81 = vld [vmem:[%s1 + $0xd8] sm:$0xf]
  %v82 = vld [vmem:[%s1 + $0xdc] sm:$0xf]
  %v83 = vld [vmem:[%s1 + $0xe0] sm:$0xf]
  %v84 = vld [vmem:[%s1 + $0xe4] sm:$0xf]
  %v85 = vld [vmem:[%s1 + $0xe8] sm:$0xf]
  %v86 = vld [vmem:[%s1 + $0xec] sm:$0xf]
  %v87 = vld [vmem:[%s1 + $0xf0] sm:$0xf]
  %v88 = vld [vmem:[%s1 + $0xf4] sm:$0xf]
  %v89 = vld [vmem:[%s1 + $0xf8] sm:$0xf]
  %v90 = vld [vmem:[%s1 + $0xfc] sm:$0xf]
  %v91 = vld [vmem:[%s1 + $0x100] sm:$0xf]
  %v92 = vld [vmem:[%s1 + $0x104] sm:$0xf]
  %v93 = vld [vmem:[%s1 + $0x108] sm:$0xf]
  %v94 = vld [vmem:[%s1 + $0x10c] sm:$0xf]
  %v95 = vld [vmem:[%s1 + $0x110] sm:$0xf]
  %v96 = vld [vmem:[%s1 + $0x114] sm:$0xf]
  %v97 = vld [vmem:[%s1 + $0x118] sm:$0xf]
  %v98 = vld [vmem:[%s1 + $0x11c] sm:$0xf]
  %v99 = vld [vmem:[%s1 + $0x120] sm:$0xf]
  %v100 = vld [vmem:[%s1 + $0x124] sm:$0xf]
  %v101 = vld [vmem:[%s1 + $0x128] sm:$0xf]
  %v102 = vld [vmem:[%s1 + $0x12c] sm:$0xf]
  %v103 = vld [vmem:[%s1 + $0x130] sm:$0xf]
  %v104 = vld [vmem:[%s1 + $0x134] sm:$0xf]
  %v105 = vld [vmem:[%s1 + $0x138] sm:$0xf]
  %v106 = vld [vmem:[%s1 + $0x13c] sm:$0xf]
  %v107 = vld [vmem:[%s2] sm:$0x1]
  %v109 = vlaneseq
  %v110 = vshrl.u32 %v109, 7
  %v111 = vsub.s32 0, %v110
  %v112 = vrot.slane %v107, %v111
  %v126 = vunpack.c.l.b16 %v15
  %v127 = vunpack.c.h.b16 %v15
  %v128 = vunpack.c.l.b16 %v16
  %v129 = vunpack.c.h.b16 %v16
  %v130 = vunpack.c.l.b16 %v17
  %v131 = vunpack.c.l.b16 %v18
  %v132 = vunpack.c.h.b16 %v18
  %v133 = vunpack.c.l.b16 %v19
  %v134 = vunpack.c.h.b16 %v19
  %v135 = vunpack.c.l.b16 %v20
  %v136 = vunpack.c.l.b16 %v21
  %v137 = vunpack.c.h.b16 %v21
  %v138 = vunpack.c.l.b16 %v22
  %v139 = vunpack.c.h.b16 %v22
  %v140 = vunpack.c.l.b16 %v23
  %v141 = vunpack.c.l.b16 %v24
  %v142 = vunpack.c.h.b16 %v24
  %v143 = vunpack.c.l.b16 %v25
  %v144 = vunpack.c.h.b16 %v25
  %v145 = vunpack.c.l.b16 %v26
  %v146 = vpack.c.b16 %v131, %v126
  %v147 = vpack.c.b16 %v132, %v127
  %v148 = vpack.c.b16 %v133, %v128
  %v149 = vpack.c.b16 %v134, %v129
  %v150 = vpack.c.b16 %v135, %v130
  %v151 = vpack.c.b16 %v141, %v136
  %v152 = vpack.c.b16 %v142, %v137
  %v153 = vpack.c.b16 %v143, %v138
  %v154 = vpack.c.b16 %v144, %v139
  %v155 = vpack.c.b16 %v145, %v140
  %v246 = vunpack.c.l.b16 %v27
  %v247 = vunpack.c.l.b16 %v28
  %v248 = vunpack.c.l.b16 %v29
  %v249 = vunpack.c.l.b16 %v30
  %v250 = vunpack.c.l.b16 %v31
  %v251 = vunpack.c.l.b16 %v32
  %v252 = vunpack.c.l.b16 %v33
  %v253 = vunpack.c.l.b16 %v34
  %v254 = vunpack.c.l.b16 %v35
  %v255 = vunpack.c.l.b16 %v36
  %v256 = vunpack.c.l.b16 %v37
  %v257 = vunpack.c.l.b16 %v38
  %v258 = vunpack.c.l.b16 %v39
  %v259 = vunpack.c.l.b16 %v40
  %v260 = vunpack.c.l.b16 %v41
  %v261 = vunpack.c.l.b16 %v42
  %v262 = vunpack.c.l.b16 %v43
  %v263 = vunpack.c.l.b16 %v44
  %v264 = vunpack.c.l.b16 %v45
  %v265 = vunpack.c.l.b16 %v46
  %v266 = vunpack.c.l.b16 %v47
  %v267 = vunpack.c.l.b16 %v48
  %v268 = vunpack.c.l.b16 %v49
  %v269 = vunpack.c.l.b16 %v50
  %v270 = vunpack.c.l.b16 %v51
  %v271 = vunpack.c.l.b16 %v52
  %v272 = vunpack.c.l.b16 %v53
  %v273 = vunpack.c.l.b16 %v54
  %v274 = vunpack.c.l.b16 %v55
  %v275 = vunpack.c.l.b16 %v56
  %v276 = vunpack.c.l.b16 %v57
  %v277 = vunpack.c.l.b16 %v58
  %v278 = vunpack.c.l.b16 %v59
  %v279 = vunpack.c.l.b16 %v60
  %v280 = vunpack.c.l.b16 %v61
  %v281 = vunpack.c.l.b16 %v62
  %v282 = vunpack.c.l.b16 %v63
  %v283 = vunpack.c.l.b16 %v64
  %v284 = vunpack.c.l.b16 %v65
  %v285 = vunpack.c.l.b16 %v66
  %v286 = vunpack.c.l.b16 %v67
  %v287 = vunpack.c.l.b16 %v68
  %v288 = vunpack.c.l.b16 %v69
  %v289 = vunpack.c.l.b16 %v70
  %v290 = vunpack.c.l.b16 %v71
  %v291 = vunpack.c.l.b16 %v72
  %v292 = vunpack.c.l.b16 %v73
  %v293 = vunpack.c.l.b16 %v74
  %v294 = vunpack.c.l.b16 %v75
  %v295 = vunpack.c.l.b16 %v76
  %v296 = vunpack.c.l.b16 %v77
  %v297 = vunpack.c.l.b16 %v78
  %v298 = vunpack.c.l.b16 %v79
  %v299 = vunpack.c.l.b16 %v80
  %v300 = vunpack.c.l.b16 %v81
  %v301 = vunpack.c.l.b16 %v82
  %v302 = vunpack.c.l.b16 %v83
  %v303 = vunpack.c.l.b16 %v84
  %v304 = vunpack.c.l.b16 %v85
  %v305 = vunpack.c.l.b16 %v86
  %v306 = vunpack.c.l.b16 %v87
  %v307 = vunpack.c.l.b16 %v88
  %v308 = vunpack.c.l.b16 %v89
  %v309 = vunpack.c.l.b16 %v90
  %v310 = vunpack.c.l.b16 %v91
  %v311 = vunpack.c.l.b16 %v92
  %v312 = vunpack.c.l.b16 %v93
  %v313 = vunpack.c.l.b16 %v94
  %v314 = vunpack.c.l.b16 %v95
  %v315 = vunpack.c.l.b16 %v96
  %v316 = vunpack.c.l.b16 %v97
  %v317 = vunpack.c.l.b16 %v98
  %v318 = vunpack.c.l.b16 %v99
  %v319 = vunpack.c.l.b16 %v100
  %v320 = vunpack.c.l.b16 %v101
  %v321 = vunpack.c.l.b16 %v102
  %v322 = vunpack.c.l.b16 %v103
  %v323 = vunpack.c.l.b16 %v104
  %v324 = vunpack.c.l.b16 %v105
  %v325 = vunpack.c.l.b16 %v106
  %v326 = vpack.c.b16 %v247, %v246
  %v327 = vpack.c.b16 %v249, %v248
  %v328 = vpack.c.b16 %v251, %v250
  %v329 = vpack.c.b16 %v253, %v252
  %v330 = vpack.c.b16 %v255, %v254
  %v331 = vpack.c.b16 %v257, %v256
  %v332 = vpack.c.b16 %v259, %v258
  %v333 = vpack.c.b16 %v261, %v260
  %v334 = vpack.c.b16 %v263, %v262
  %v335 = vpack.c.b16 %v265, %v264
  %v336 = vpack.c.b16 %v267, %v266
  %v337 = vpack.c.b16 %v269, %v268
  %v338 = vpack.c.b16 %v271, %v270
  %v339 = vpack.c.b16 %v273, %v272
  %v340 = vpack.c.b16 %v275, %v274
  %v341 = vpack.c.b16 %v277, %v276
  %v342 = vpack.c.b16 %v279, %v278
  %v343 = vpack.c.b16 %v281, %v280
  %v344 = vpack.c.b16 %v283, %v282
  %v345 = vpack.c.b16 %v285, %v284
  %v346 = vpack.c.b16 %v287, %v286
  %v347 = vpack.c.b16 %v289, %v288
  %v348 = vpack.c.b16 %v291, %v290
  %v349 = vpack.c.b16 %v293, %v292
  %v350 = vpack.c.b16 %v295, %v294
  %v351 = vpack.c.b16 %v297, %v296
  %v352 = vpack.c.b16 %v299, %v298
  %v353 = vpack.c.b16 %v301, %v300
  %v354 = vpack.c.b16 %v303, %v302
  %v355 = vpack.c.b16 %v305, %v304
  %v356 = vpack.c.b16 %v307, %v306
  %v357 = vpack.c.b16 %v309, %v308
  %v358 = vpack.c.b16 %v311, %v310
  %v359 = vpack.c.b16 %v313, %v312
  %v360 = vpack.c.b16 %v315, %v314
  %v361 = vpack.c.b16 %v317, %v316
  %v362 = vpack.c.b16 %v319, %v318
  %v363 = vpack.c.b16 %v321, %v320
  %v364 = vpack.c.b16 %v323, %v322
  %v365 = vpack.c.b16 %v325, %v324
  %406 = vmatprep.subr.bf16.mxu0 0
  %407 = vmatpush1.bf16.msra.mxu0 %v333
  %408 = vmatprep.subr.bf16.mxu0 0
  %409 = vmatpush1.bf16.msra.mxu0 %v332
  %410 = vmatprep.subr.bf16.mxu0 0
  %411 = vmatpush1.bf16.msra.mxu0 %v331
  %412 = vmatprep.subr.bf16.mxu0 0
  %413 = vmatpush1.bf16.msra.mxu0 %v330
  %414 = vmatprep.subr.bf16.mxu0 0
  %415 = vmatpush1.bf16.msra.mxu0 %v329
  %416 = vmatprep.subr.bf16.mxu0 0
  %417 = vmatpush1.bf16.msra.mxu0 %v328
  %418 = vmatprep.subr.bf16.mxu0 0
  %419 = vmatpush1.bf16.msra.mxu0 %v327
  %420 = vmatprep.subr.bf16.mxu0 0
  %421 = vmatpush1.bf16.msra.mxu0 %v326
  %422 = vmatprep.subr.bf16.mxu0 0
  %423 = vmatpush2.bf16.msra.mxu0 %v341
  %424 = vmatprep.subr.bf16.mxu0 0
  %425 = vmatpush2.bf16.msra.mxu0 %v340
  %426 = vmatprep.subr.bf16.mxu0 0
  %427 = vmatpush2.bf16.msra.mxu0 %v339
  %428 = vmatprep.subr.bf16.mxu0 0
  %429 = vmatpush2.bf16.msra.mxu0 %v338
  %430 = vmatprep.subr.bf16.mxu0 0
  %431 = vmatpush2.bf16.msra.mxu0 %v337
  %432 = vmatprep.subr.bf16.mxu0 0
  %433 = vmatpush2.bf16.msra.mxu0 %v336
  %434 = vmatprep.subr.bf16.mxu0 0
  %435 = vmatpush2.bf16.msra.mxu0 %v335
  %436 = vmatprep.subr.bf16.mxu0 0
  %437 = vmatpush2.bf16.msra.mxu0 %v334
  %438 = vmatprep.mubr.bf16.mxu0 %v147
  %439 = vmatmul.mubr.bf16.gmra.mxu0 %v146
  %v440 = vpop.f32.mrf.mxu0
  %v441 = vadd.f32 %v112, %v440
  %v442 = vpop.f32.mrf.mxu0
  %v443 = vpop.f32.mrf.mxu0
  %v444 = vadd.f32 %v112, %v443
  %v445 = vpop.f32.mrf.mxu0
  %446 = vmatprep.mubr.bf16.mxu0 %v152
  %447 = vmatmul.mubr.bf16.gmra.mxu0 %v151
  %v448 = vpop.f32.mrf.mxu0
  %v449 = vadd.f32 %v112, %v448
  %v450 = vpop.f32.mrf.mxu0
  %v451 = vpop.f32.mrf.mxu0
  %v452 = vadd.f32 %v112, %v451
  %v453 = vpop.f32.mrf.mxu0
  %454 = vdwg.mxu0
  %455 = vmatprep.subr.bf16.mxu0 0
  %456 = vmatpush1.bf16.msra.mxu0 %v349
  %457 = vmatprep.subr.bf16.mxu0 0
  %458 = vmatpush1.bf16.msra.mxu0 %v348
  %459 = vmatprep.subr.bf16.mxu0 0
  %460 = vmatpush1.bf16.msra.mxu0 %v347
  %461 = vmatprep.subr.bf16.mxu0 0
  %462 = vmatpush1.bf16.msra.mxu0 %v346
  %463 = vmatprep.subr.bf16.mxu0 0
  %464 = vmatpush1.bf16.msra.mxu0 %v345
  %465 = vmatprep.subr.bf16.mxu0 0
  %466 = vmatpush1.bf16.msra.mxu0 %v344
  %467 = vmatprep.subr.bf16.mxu0 0
  %468 = vmatpush1.bf16.msra.mxu0 %v343
  %469 = vmatprep.subr.bf16.mxu0 0
  %470 = vmatpush1.bf16.msra.mxu0 %v342
  %471 = vmatprep.subr.bf16.mxu0 0
  %472 = vmatpush2.bf16.msra.mxu0 %v357
  %473 = vmatprep.subr.bf16.mxu0 0
  %474 = vmatpush2.bf16.msra.mxu0 %v356
  %475 = vmatprep.subr.bf16.mxu0 0
  %476 = vmatpush2.bf16.msra.mxu0 %v355
  %477 = vmatprep.subr.bf16.mxu0 0
  %478 = vmatpush2.bf16.msra.mxu0 %v354
  %479 = vmatprep.subr.bf16.mxu0 0
  %480 = vmatpush2.bf16.msra.mxu0 %v353
  %481 = vmatprep.subr.bf16.mxu0 0
  %482 = vmatpush2.bf16.msra.mxu0 %v352
  %483 = vmatprep.subr.bf16.mxu0 0
  %484 = vmatpush2.bf16.msra.mxu0 %v351
  %485 = vmatprep.subr.bf16.mxu0 0
  %486 = vmatpush2.bf16.msra.mxu0 %v350
  %487 = vmatprep.mubr.bf16.mxu0 %v149
  %488 = vmatmul.mubr.bf16.gmra.mxu0 %v148
  %v489 = vpop.f32.mrf.mxu0
  %v490 = vadd.f32 %v441, %v489
  %v491 = vpop.f32.mrf.mxu0
  %v492 = vpop.f32.mrf.mxu0
  %v493 = vadd.f32 %v444, %v492
  %v494 = vpop.f32.mrf.mxu0
  %495 = vmatprep.mubr.bf16.mxu0 %v154
  %496 = vmatmul.mubr.bf16.gmra.mxu0 %v153
  %v497 = vpop.f32.mrf.mxu0
  %v498 = vadd.f32 %v449, %v497
  %v499 = vpop.f32.mrf.mxu0
  %v500 = vpop.f32.mrf.mxu0
  %v501 = vadd.f32 %v452, %v500
  %v502 = vpop.f32.mrf.mxu0
  %503 = vdwg.mxu0
  %504 = vmatprep.subr.bf16.mxu0 0
  %505 = vmatpush1.bf16.msra.mxu0 %v365
  %506 = vmatprep.subr.bf16.mxu0 0
  %507 = vmatpush1.bf16.msra.mxu0 %v364
  %508 = vmatprep.subr.bf16.mxu0 0
  %509 = vmatpush1.bf16.msra.mxu0 %v363
  %510 = vmatprep.subr.bf16.mxu0 0
  %511 = vmatpush1.bf16.msra.mxu0 %v362
  %512 = vmatprep.subr.bf16.mxu0 0
  %513 = vmatpush1.bf16.msra.mxu0 %v361
  %514 = vmatprep.subr.bf16.mxu0 0
  %515 = vmatpush1.bf16.msra.mxu0 %v360
  %516 = vmatprep.subr.bf16.mxu0 0
  %517 = vmatpush1.bf16.msra.mxu0 %v359
  %518 = vmatprep.subr.bf16.mxu0 0
  %519 = vmatpush1.bf16.msra.mxu0 %v358
  %520 = vmatprep.subr.bf16.mxu0 0
  %521 = vmatpush2.bf16.msra.mxu0 0
  %522 = vmatprep.subr.bf16.mxu0 0
  %523 = vmatpush2.bf16.msra.mxu0 0
  %524 = vmatprep.subr.bf16.mxu0 0
  %525 = vmatpush2.bf16.msra.mxu0 0
  %526 = vmatprep.subr.bf16.mxu0 0
  %527 = vmatpush2.bf16.msra.mxu0 0
  %528 = vmatprep.subr.bf16.mxu0 0
  %529 = vmatpush2.bf16.msra.mxu0 0
  %530 = vmatprep.subr.bf16.mxu0 0
  %531 = vmatpush2.bf16.msra.mxu0 0
  %532 = vmatprep.subr.bf16.mxu0 0
  %533 = vmatpush2.bf16.msra.mxu0 0
  %534 = vmatprep.subr.bf16.mxu0 0
  %535 = vmatpush2.bf16.msra.mxu0 0
  %536 = vmatprep.mubr.bf16.mxu0 0
  %537 = vmatmul.mubr.bf16.gmra.mxu0 %v150
  %v538 = vpop.f32.mrf.mxu0
  %v539 = vadd.f32 %v490, %v538
  %v540 = vpop.f32.mrf.mxu0
  %v541 = vpop.f32.mrf.mxu0
  %v542 = vadd.f32 %v493, %v541
  %v543 = vpop.f32.mrf.mxu0
  %544 = vmatprep.mubr.bf16.mxu0 0
  %545 = vmatmul.mubr.bf16.gmra.mxu0 %v155
  %v546 = vpop.f32.mrf.mxu0
  %v547 = vadd.f32 %v498, %v546
  %v548 = vpop.f32.mrf.mxu0
  %v549 = vpop.f32.mrf.mxu0
  %v550 = vadd.f32 %v501, %v549
  %v551 = vpop.f32.mrf.mxu0
  %552 = vdwg.mxu0
  %v553 = vmax.f32 %v539, 0.0
  %v554 = vmax.f32 %v542, 0.0
  %v555 = vmax.f32 %v547, 0.0
  %v556 = vmax.f32 %v550, 0.0
  %557 = vst [vmem:[%s3] sm:$0xff] %v553
  %558 = vst [vmem:[%s3 + $0x8] sm:$0xff] %v554
  %559 = vst [vmem:[%s3 + $0x10] sm:$0xff] %v555
  %560 = vst [vmem:[%s3 + $0x18] sm:$0xff] %v556
  // Predicated region
  $region14: #{full_model_forward.6} parent=0 // pred_check
    _
  $region15: #{full_model_forward.6} parent=0 // pred_check_branch
    %562 = sbr.rel (0) target = $region17
  $region16: #{full_model_forward.6} parent=0 // pred_region
    _
  $region17: #{full_model_forward.6} parent=0 // pred_fallthru
    _
  // Predicated region
  $region18: #{full_model_forward.6} parent=0 // pred_check
    _
  $region19: #{full_model_forward.6} parent=0 // pred_check_branch
    %564 = sbr.rel (0) target = $region21
  $region20: #{full_model_forward.6} parent=0 // pred_region
    _
  $region21: #{full_model_forward.6} parent=0 // pred_fallthru
    _

// kernel: full_model_forward.7
$region0: #{full_model_forward.7}
  #allocation0 [shape = 'u32[]', space=smem, size = 0x4, offset = 0x4, fixed_abs, tag = 'smem constant byte address 0x4 - core index']
  #allocation1 [shape = 'u32[144,128]{1,0:T(1,128)}', space=vmem, size = 0x12000, scoped, tag = 'internal scratch']
  %s0 = inlined_call_operand.vmem [shape: f32[8,128], index: 0, kind: input, shape index: {}]
  %s1 = inlined_call_operand.vmem [shape: f32[8,1024], index: 1, kind: input, shape index: {}]
  %s2 = inlined_call_operand.vmem [shape: f32[128,256], index: 2, kind: input, shape index: {}]
  %s3 = inlined_call_operand.vmem [shape: f32[1,256], index: 3, kind: input, shape index: {}]
  %s4 = inlined_call_operand.vmem [shape: f32[256,128], index: 4, kind: input, shape index: {}]
  %s5 = inlined_call_operand.vmem [shape: f32[1,128], index: 5, kind: input, shape index: {}]
  %s6 = inlined_call_operand.vmem [shape: f32[128,256], index: 6, kind: input, shape index: {}]
  %s7 = inlined_call_operand.vmem [shape: f32[1024,256], index: 7, kind: input, shape index: {}]
  %s8 = inlined_call_operand.vmem [shape: f32[1,256], index: 8, kind: input, shape index: {}]
  %s9 = inlined_call_operand.vmem [shape: f32[256,128], index: 9, kind: input, shape index: {}]
  %s10 = inlined_call_operand.vmem [shape: f32[1,128], index: 10, kind: input, shape index: {}]
  %s11 = inlined_call_operand.vmem [shape: f32[128,128], index: 11, kind: input, shape index: {}]
  %s12 = inlined_call_operand.vmem [shape: f32[1,128], index: 12, kind: input, shape index: {}]
  %s13 = inlined_call_operand.vmem [shape: f32[8,128], index: 13, kind: input, shape index: {}]
  %s14 = inlined_call_operand.vmem [shape: f32[8,128], index: 14, kind: output, shape index: {}]
  %s15 = sld [smem:[#allocation0]]
  $region66: #{full_model_forward.7} parent=0
    _
  %s17 = ssub.s32 1, %s15
  %s18 = scalar_select 0, %s17, %s15
  // Predicated region
  $region2: #{full_model_forward.7} parent=0 // pred_check
    _
  $region3: #{full_model_forward.7} parent=0 // pred_check_branch
    %20 = sbr.rel (0) target = $region5
  $region4: #{full_model_forward.7} parent=0 // pred_region
    _
  $region5: #{full_model_forward.7} parent=0 // pred_fallthru
    _
  // Predicated region
  $region6: #{full_model_forward.7} parent=0 // pred_check
    _
  $region7: #{full_model_forward.7} parent=0 // pred_check_branch
    %22 = sbr.rel (0) target = $region9
  $region8: #{full_model_forward.7} parent=0 // pred_region
    _
  $region9: #{full_model_forward.7} parent=0 // pred_fallthru
    _
  // Predicated region
  $region10: #{full_model_forward.7} parent=0 // pred_check
    _
  $region11: #{full_model_forward.7} parent=0 // pred_check_branch
    %24 = sbr.rel (0) target = $region13
  $region12: #{full_model_forward.7} parent=0 // pred_region
    _
  $region13: #{full_model_forward.7} parent=0 // pred_fallthru
    _
  // Predicated region
  $region14: #{full_model_forward.7} parent=0 // pred_check
    _
  $region15: #{full_model_forward.7} parent=0 // pred_check_branch
    %26 = sbr.rel (0) target = $region17
  $region16: #{full_model_forward.7} parent=0 // pred_region
    _
  $region17: #{full_model_forward.7} parent=0 // pred_fallthru
    _
  // Predicated region
  $region18: #{full_model_forward.7} parent=0 // pred_check
    _
  $region19: #{full_model_forward.7} parent=0 // pred_check_branch
    %28 = sbr.rel (0) target = $region21
  $region20: #{full_model_forward.7} parent=0 // pred_region
    _
  $region21: #{full_model_forward.7} parent=0 // pred_fallthru
    _
  // Predicated region
  $region22: #{full_model_forward.7} parent=0 // pred_check
    _
  $region23: #{full_model_forward.7} parent=0 // pred_check_branch
    %30 = sbr.rel (0) target = $region25
  $region24: #{full_model_forward.7} parent=0 // pred_region
    _
  $region25: #{full_model_forward.7} parent=0 // pred_fallthru
    _
  // Predicated region
  $region26: #{full_model_forward.7} parent=0 // pred_check
    _
  $region27: #{full_model_forward.7} parent=0 // pred_check_branch
    %32 = sbr.rel (0) target = $region29
  $region28: #{full_model_forward.7} parent=0 // pred_region
    _
  $region29: #{full_model_forward.7} parent=0 // pred_fallthru
    _
  // Predicated region
  $region30: #{full_model_forward.7} parent=0 // pred_check
    _
  $region31: #{full_model_forward.7} parent=0 // pred_check_branch
    %34 = sbr.rel (0) target = $region33
  $region32: #{full_model_forward.7} parent=0 // pred_region
    _
  $region33: #{full_model_forward.7} parent=0 // pred_fallthru
    _
  // Predicated region
  $region34: #{full_model_forward.7} parent=0 // pred_check
    _
  $region35: #{full_model_forward.7} parent=0 // pred_check_branch
    %36 = sbr.rel (0) target = $region37
  $region36: #{full_model_forward.7} parent=0 // pred_region
    _
  $region37: #{full_model_forward.7} parent=0 // pred_fallthru
    _
  // Predicated region
  $region38: #{full_model_forward.7} parent=0 // pred_check
    _
  $region39: #{full_model_forward.7} parent=0 // pred_check_branch
    %38 = sbr.rel (0) target = $region41
  $region40: #{full_model_forward.7} parent=0 // pred_region
    _
  $region41: #{full_model_forward.7} parent=0 // pred_fallthru
    _
  // Predicated region
  $region42: #{full_model_forward.7} parent=0 // pred_check
    _
  $region43: #{full_model_forward.7} parent=0 // pred_check_branch
    %40 = sbr.rel (0) target = $region45
  $region44: #{full_model_forward.7} parent=0 // pred_region
    _
  $region45: #{full_model_forward.7} parent=0 // pred_fallthru
    _
  // Predicated region
  $region46: #{full_model_forward.7} parent=0 // pred_check
    _
  $region47: #{full_model_forward.7} parent=0 // pred_check_branch
    %42 = sbr.rel (0) target = $region49
  $region48: #{full_model_forward.7} parent=0 // pred_region
    _
  $region49: #{full_model_forward.7} parent=0 // pred_fallthru
    _
  // Predicated region
  $region50: #{full_model_forward.7} parent=0 // pred_check
    _
  $region51: #{full_model_forward.7} parent=0 // pred_check_branch
    %44 = sbr.rel (0) target = $region53
  $region52: #{full_model_forward.7} parent=0 // pred_region
    _
  $region53: #{full_model_forward.7} parent=0 // pred_fallthru
    _
  // Predicated region
  $region54: #{full_model_forward.7} parent=0 // pred_check
    _
  $region55: #{full_model_forward.7} parent=0 // pred_check_branch
    %46 = sbr.rel (0) target = $region57
  $region56: #{full_model_forward.7} parent=0 // pred_region
    _
  $region57: #{full_model_forward.7} parent=0 // pred_fallthru
    _
  %v47 = vld [vmem:[%s0] sm:$0xff]
  %v48 = vld [vmem:[%s2] sm:$0xff]
  %v49 = vld [vmem:[%s2 + $0x8] sm:$0xff]
  %v50 = vld [vmem:[%s2 + $0x10] sm:$0xff]
  %v51 = vld [vmem:[%s2 + $0x18] sm:$0xff]
  %v52 = vld [vmem:[%s2 + $0x20] sm:$0xff]
  %v53 = vld [vmem:[%s2 + $0x28] sm:$0xff]
  %v54 = vld [vmem:[%s2 + $0x30] sm:$0xff]
  %v55 = vld [vmem:[%s2 + $0x38] sm:$0xff]
  %v56 = vld [vmem:[%s2 + $0x40] sm:$0xff]
  %v57 = vld [vmem:[%s2 + $0x48] sm:$0xff]
  %v58 = vld [vmem:[%s2 + $0x50] sm:$0xff]
  %v59 = vld [vmem:[%s2 + $0x58] sm:$0xff]
  %v60 = vld [vmem:[%s2 + $0x60] sm:$0xff]
  %v61 = vld [vmem:[%s2 + $0x68] sm:$0xff]
  %v62 = vld [vmem:[%s2 + $0x70] sm:$0xff]
  %v63 = vld [vmem:[%s2 + $0x78] sm:$0xff]
  %v64 = vld [vmem:[%s2 + $0x80] sm:$0xff]
  %v65 = vld [vmem:[%s2 + $0x88] sm:$0xff]
  %v66 = vld [vmem:[%s2 + $0x90] sm:$0xff]
  %v67 = vld [vmem:[%s2 + $0x98] sm:$0xff]
  %v68 = vld [vmem:[%s2 + $0xa0] sm:$0xff]
  %v69 = vld [vmem:[%s2 + $0xa8] sm:$0xff]
  %v70 = vld [vmem:[%s2 + $0xb0] sm:$0xff]
  %v71 = vld [vmem:[%s2 + $0xb8] sm:$0xff]
  %v72 = vld [vmem:[%s2 + $0xc0] sm:$0xff]
  %v73 = vld [vmem:[%s2 + $0xc8] sm:$0xff]
  %v74 = vld [vmem:[%s2 + $0xd0] sm:$0xff]
  %v75 = vld [vmem:[%s2 + $0xd8] sm:$0xff]
  %v76 = vld [vmem:[%s2 + $0xe0] sm:$0xff]
  %v77 = vld [vmem:[%s2 + $0xe8] sm:$0xff]
  %v78 = vld [vmem:[%s2 + $0xf0] sm:$0xff]
  %v79 = vld [vmem:[%s2 + $0xf8] sm:$0xff]
  %v80 = vld [vmem:[%s3] sm:$0x3]
  %v82 = vlaneseq
  %v83 = vshrl.u32 %v82, 7
  %v84 = vsub.s32 0, %v83
  %v85 = vrot.slane %v80, %v84
  %v86 = vlaneseq
  %v87 = vshrl.u32 %v86, 7
  %v88 = vsub.s32 1, %v87
  %v89 = vrot.slane %v80, %v88
  %92 = vmatprep.subr.mxu0 %v79
  %93 = vmatpush1.msra.mxu0 %v78
  %94 = vmatprep.subr.mxu0 %v77
  %95 = vmatpush1.msra.mxu0 %v76
  %96 = vmatprep.subr.mxu0 %v75
  %97 = vmatpush1.msra.mxu0 %v74
  %98 = vmatprep.subr.mxu0 %v73
  %99 = vmatpush1.msra.mxu0 %v72
  %100 = vmatprep.subr.mxu0 %v71
  %101 = vmatpush1.msra.mxu0 %v70
  %102 = vmatprep.subr.mxu0 %v69
  %103 = vmatpush1.msra.mxu0 %v68
  %104 = vmatprep.subr.mxu0 %v67
  %105 = vmatpush1.msra.mxu0 %v66
  %106 = vmatprep.subr.mxu0 %v65
  %107 = vmatpush1.msra.mxu0 %v64
  %108 = vmatprep.subr.mxu0 %v63
  %109 = vmatpush1.msra.mxu0 %v62
  %110 = vmatprep.subr.mxu0 %v61
  %111 = vmatpush1.msra.mxu0 %v60
  %112 = vmatprep.subr.mxu0 %v59
  %113 = vmatpush1.msra.mxu0 %v58
  %114 = vmatprep.subr.mxu0 %v57
  %115 = vmatpush1.msra.mxu0 %v56
  %116 = vmatprep.subr.mxu0 %v55
  %117 = vmatpush1.msra.mxu0 %v54
  %118 = vmatprep.subr.mxu0 %v53
  %119 = vmatpush1.msra.mxu0 %v52
  %120 = vmatprep.subr.mxu0 %v51
  %121 = vmatpush1.msra.mxu0 %v50
  %122 = vmatprep.subr.mxu0 %v49
  %123 = vmatpush1.msra.mxu0 %v48
  %124 = vmatprep.subr.mxu0 0.0
  %125 = vmatpush2.msra.mxu0 0.0
  %126 = vmatprep.subr.mxu0 0.0
  %127 = vmatpush2.msra.mxu0 0.0
  %128 = vmatprep.subr.mxu0 0.0
  %129 = vmatpush2.msra.mxu0 0.0
  %130 = vmatprep.subr.mxu0 0.0
  %131 = vmatpush2.msra.mxu0 0.0
  %132 = vmatprep.subr.mxu0 0.0
  %133 = vmatpush2.msra.mxu0 0.0
  %134 = vmatprep.subr.mxu0 0.0
  %135 = vmatpush2.msra.mxu0 0.0
  %136 = vmatprep.subr.mxu0 0.0
  %137 = vmatpush2.msra.mxu0 0.0
  %138 = vmatprep.subr.mxu0 0.0
  %139 = vmatpush2.msra.mxu0 0.0
  %140 = vmatprep.subr.mxu0 0.0
  %141 = vmatpush2.msra.mxu0 0.0
  %142 = vmatprep.subr.mxu0 0.0
  %143 = vmatpush2.msra.mxu0 0.0
  %144 = vmatprep.subr.mxu0 0.0
  %145 = vmatpush2.msra.mxu0 0.0
  %146 = vmatprep.subr.mxu0 0.0
  %147 = vmatpush2.msra.mxu0 0.0
  %148 = vmatprep.subr.mxu0 0.0
  %149 = vmatpush2.msra.mxu0 0.0
  %150 = vmatprep.subr.mxu0 0.0
  %151 = vmatpush2.msra.mxu0 0.0
  %152 = vmatprep.subr.mxu0 0.0
  %153 = vmatpush2.msra.mxu0 0.0
  %154 = vmatprep.subr.mxu0 0.0
  %155 = vmatpush2.msra.mxu0 0.0
  %156 = vmatprep.mubr.f32.mxu0 0.0
  %157 = vmatmul.mubr.f32.gmra.mxu0 %v47
  %v158 = vpop.f32.mrf.mxu0
  %v159 = vadd.f32 %v85, %v158
  %v160 = vpop.f32.mrf.mxu0
  %v161 = vadd.f32 %v89, %v160
  %162 = vdwg.mxu0
  %v163 = vmax.f32 %v159, 0.0
  %v164 = vmax.f32 %v161, 0.0
  %v165 = vld [vmem:[%s4] sm:$0xff]
  %v166 = vld [vmem:[%s4 + $0x8] sm:$0xff]
  %v167 = vld [vmem:[%s4 + $0x10] sm:$0xff]
  %v168 = vld [vmem:[%s4 + $0x18] sm:$0xff]
  %v169 = vld [vmem:[%s4 + $0x20] sm:$0xff]
  %v170 = vld [vmem:[%s4 + $0x28] sm:$0xff]
  %v171 = vld [vmem:[%s4 + $0x30] sm:$0xff]
  %v172 = vld [vmem:[%s4 + $0x38] sm:$0xff]
  %v173 = vld [vmem:[%s4 + $0x40] sm:$0xff]
  %v174 = vld [vmem:[%s4 + $0x48] sm:$0xff]
  %v175 = vld [vmem:[%s4 + $0x50] sm:$0xff]
  %v176 = vld [vmem:[%s4 + $0x58] sm:$0xff]
  %v177 = vld [vmem:[%s4 + $0x60] sm:$0xff]
  %v178 = vld [vmem:[%s4 + $0x68] sm:$0xff]
  %v179 = vld [vmem:[%s4 + $0x70] sm:$0xff]
  %v180 = vld [vmem:[%s4 + $0x78] sm:$0xff]
  %v181 = vld [vmem:[%s4 + $0x80] sm:$0xff]
  %v182 = vld [vmem:[%s4 + $0x88] sm:$0xff]
  %v183 = vld [vmem:[%s4 + $0x90] sm:$0xff]
  %v184 = vld [vmem:[%s4 + $0x98] sm:$0xff]
  %v185 = vld [vmem:[%s4 + $0xa0] sm:$0xff]
  %v186 = vld [vmem:[%s4 + $0xa8] sm:$0xff]
  %v187 = vld [vmem:[%s4 + $0xb0] sm:$0xff]
  %v188 = vld [vmem:[%s4 + $0xb8] sm:$0xff]
  %v189 = vld [vmem:[%s4 + $0xc0] sm:$0xff]
  %v190 = vld [vmem:[%s4 + $0xc8] sm:$0xff]
  %v191 = vld [vmem:[%s4 + $0xd0] sm:$0xff]
  %v192 = vld [vmem:[%s4 + $0xd8] sm:$0xff]
  %v193 = vld [vmem:[%s4 + $0xe0] sm:$0xff]
  %v194 = vld [vmem:[%s4 + $0xe8] sm:$0xff]
  %v195 = vld [vmem:[%s4 + $0xf0] sm:$0xff]
  %v196 = vld [vmem:[%s4 + $0xf8] sm:$0xff]
  %v197 = vld [vmem:[%s5] sm:$0x1]
  %v199 = vlaneseq
  %v200 = vshrl.u32 %v199, 7
  %v201 = vsub.s32 0, %v200
  %v202 = vrot.slane %v197, %v201
  %204 = vmatprep.subr.mxu0 0.0
  %205 = vmatpush1.msra.mxu0 %v180
  %206 = vmatprep.subr.mxu0 0.0
  %207 = vmatpush1.msra.mxu0 %v179
  %208 = vmatprep.subr.mxu0 0.0
  %209 = vmatpush1.msra.mxu0 %v178
  %210 = vmatprep.subr.mxu0 0.0
  %211 = vmatpush1.msra.mxu0 %v177
  %212 = vmatprep.subr.mxu0 0.0
  %213 = vmatpush1.msra.mxu0 %v176
  %214 = vmatprep.subr.mxu0 0.0
  %215 = vmatpush1.msra.mxu0 %v175
  %216 = vmatprep.subr.mxu0 0.0
  %217 = vmatpush1.msra.mxu0 %v174
  %218 = vmatprep.subr.mxu0 0.0
  %219 = vmatpush1.msra.mxu0 %v173
  %220 = vmatprep.subr.mxu0 0.0
  %221 = vmatpush1.msra.mxu0 %v172
  %222 = vmatprep.subr.mxu0 0.0
  %223 = vmatpush1.msra.mxu0 %v171
  %224 = vmatprep.subr.mxu0 0.0
  %225 = vmatpush1.msra.mxu0 %v170
  %226 = vmatprep.subr.mxu0 0.0
  %227 = vmatpush1.msra.mxu0 %v169
  %228 = vmatprep.subr.mxu0 0.0
  %229 = vmatpush1.msra.mxu0 %v168
  %230 = vmatprep.subr.mxu0 0.0
  %231 = vmatpush1.msra.mxu0 %v167
  %232 = vmatprep.subr.mxu0 0.0
  %233 = vmatpush1.msra.mxu0 %v166
  %234 = vmatprep.subr.mxu0 0.0
  %235 = vmatpush1.msra.mxu0 %v165
  %236 = vmatprep.subr.mxu0 0.0
  %237 = vmatpush2.msra.mxu0 %v196
  %238 = vmatprep.subr.mxu0 0.0
  %239 = vmatpush2.msra.mxu0 %v195
  %240 = vmatprep.subr.mxu0 0.0
  %241 = vmatpush2.msra.mxu0 %v194
  %242 = vmatprep.subr.mxu0 0.0
  %243 = vmatpush2.msra.mxu0 %v193
  %244 = vmatprep.subr.mxu0 0.0
  %245 = vmatpush2.msra.mxu0 %v192
  %246 = vmatprep.subr.mxu0 0.0
  %247 = vmatpush2.msra.mxu0 %v191
  %248 = vmatprep.subr.mxu0 0.0
  %249 = vmatpush2.msra.mxu0 %v190
  %250 = vmatprep.subr.mxu0 0.0
  %251 = vmatpush2.msra.mxu0 %v189
  %252 = vmatprep.subr.mxu0 0.0
  %253 = vmatpush2.msra.mxu0 %v188
  %254 = vmatprep.subr.mxu0 0.0
  %255 = vmatpush2.msra.mxu0 %v187
  %256 = vmatprep.subr.mxu0 0.0
  %257 = vmatpush2.msra.mxu0 %v186
  %258 = vmatprep.subr.mxu0 0.0
  %259 = vmatpush2.msra.mxu0 %v185
  %260 = vmatprep.subr.mxu0 0.0
  %261 = vmatpush2.msra.mxu0 %v184
  %262 = vmatprep.subr.mxu0 0.0
  %263 = vmatpush2.msra.mxu0 %v183
  %264 = vmatprep.subr.mxu0 0.0
  %265 = vmatpush2.msra.mxu0 %v182
  %266 = vmatprep.subr.mxu0 0.0
  %267 = vmatpush2.msra.mxu0 %v181
  %268 = vmatprep.mubr.f32.mxu0 %v164
  %269 = vmatmul.mubr.f32.gmra.mxu0 %v163
  %v270 = vpop.f32.mrf.mxu0
  %v271 = vadd.f32 %v202, %v270
  %v272 = vpop.f32.mrf.mxu0
  %273 = vdwg.mxu0
  %v274 = vmax.f32 %v271, 0.0
  %v275 = vld [vmem:[%s6] sm:$0xff]
  %v276 = vld [vmem:[%s6 + $0x8] sm:$0xff]
  %v277 = vld [vmem:[%s6 + $0x10] sm:$0xff]
  %v278 = vld [vmem:[%s6 + $0x18] sm:$0xff]
  %v279 = vld [vmem:[%s6 + $0x20] sm:$0xff]
  %v280 = vld [vmem:[%s6 + $0x28] sm:$0xff]
  %v281 = vld [vmem:[%s6 + $0x30] sm:$0xff]
  %v282 = vld [vmem:[%s6 + $0x38] sm:$0xff]
  %v283 = vld [vmem:[%s6 + $0x40] sm:$0xff]
  %v284 = vld [vmem:[%s6 + $0x48] sm:$0xff]
  %v285 = vld [vmem:[%s6 + $0x50] sm:$0xff]
  %v286 = vld [vmem:[%s6 + $0x58] sm:$0xff]
  %v287 = vld [vmem:[%s6 + $0x60] sm:$0xff]
  %v288 = vld [vmem:[%s6 + $0x68] sm:$0xff]
  %v289 = vld [vmem:[%s6 + $0x70] sm:$0xff]
  %v290 = vld [vmem:[%s6 + $0x78] sm:$0xff]
  %v291 = vld [vmem:[%s6 + $0x80] sm:$0xff]
  %v292 = vld [vmem:[%s6 + $0x88] sm:$0xff]
  %v293 = vld [vmem:[%s6 + $0x90] sm:$0xff]
  %v294 = vld [vmem:[%s6 + $0x98] sm:$0xff]
  %v295 = vld [vmem:[%s6 + $0xa0] sm:$0xff]
  %v296 = vld [vmem:[%s6 + $0xa8] sm:$0xff]
  %v297 = vld [vmem:[%s6 + $0xb0] sm:$0xff]
  %v298 = vld [vmem:[%s6 + $0xb8] sm:$0xff]
  %v299 = vld [vmem:[%s6 + $0xc0] sm:$0xff]
  %v300 = vld [vmem:[%s6 + $0xc8] sm:$0xff]
  %v301 = vld [vmem:[%s6 + $0xd0] sm:$0xff]
  %v302 = vld [vmem:[%s6 + $0xd8] sm:$0xff]
  %v303 = vld [vmem:[%s6 + $0xe0] sm:$0xff]
  %v304 = vld [vmem:[%s6 + $0xe8] sm:$0xff]
  %v305 = vld [vmem:[%s6 + $0xf0] sm:$0xff]
  %v306 = vld [vmem:[%s6 + $0xf8] sm:$0xff]
  %v307 = vld [vmem:[%s1] sm:$0xff]
  %v308 = vld [vmem:[%s1 + $0x8] sm:$0xff]
  %v309 = vld [vmem:[%s1 + $0x10] sm:$0xff]
  %v310 = vld [vmem:[%s1 + $0x18] sm:$0xff]
  %v311 = vld [vmem:[%s1 + $0x20] sm:$0xff]
  %v312 = vld [vmem:[%s1 + $0x28] sm:$0xff]
  %v313 = vld [vmem:[%s1 + $0x30] sm:$0xff]
  %v314 = vld [vmem:[%s1 + $0x38] sm:$0xff]
  %v315 = vld [vmem:[%s7] sm:$0xff]
  %v316 = vld [vmem:[%s7 + $0x8] sm:$0xff]
  %v317 = vld [vmem:[%s7 + $0x10] sm:$0xff]
  %v318 = vld [vmem:[%s7 + $0x18] sm:$0xff]
  %v319 = vld [vmem:[%s7 + $0x20] sm:$0xff]
  %v320 = vld [vmem:[%s7 + $0x28] sm:$0xff]
  %v321 = vld [vmem:[%s7 + $0x30] sm:$0xff]
  %v322 = vld [vmem:[%s7 + $0x38] sm:$0xff]
  %v323 = vld [vmem:[%s7 + $0x40] sm:$0xff]
  %v324 = vld [vmem:[%s7 + $0x48] sm:$0xff]
  %v325 = vld [vmem:[%s7 + $0x50] sm:$0xff]
  %v326 = vld [vmem:[%s7 + $0x58] sm:$0xff]
  %v327 = vld [vmem:[%s7 + $0x60] sm:$0xff]
  %v328 = vld [vmem:[%s7 + $0x68] sm:$0xff]
  %v329 = vld [vmem:[%s7 + $0x70] sm:$0xff]
  %v330 = vld [vmem:[%s7 + $0x78] sm:$0xff]
  %v331 = vld [vmem:[%s7 + $0x80] sm:$0xff]
  %v332 = vld [vmem:[%s7 + $0x88] sm:$0xff]
  %v333 = vld [vmem:[%s7 + $0x90] sm:$0xff]
  %v334 = vld [vmem:[%s7 + $0x98] sm:$0xff]
  %v335 = vld [vmem:[%s7 + $0xa0] sm:$0xff]
  %v336 = vld [vmem:[%s7 + $0xa8] sm:$0xff]
  %v337 = vld [vmem:[%s7 + $0xb0] sm:$0xff]
  %v338 = vld [vmem:[%s7 + $0xb8] sm:$0xff]
  %v339 = vld [vmem:[%s7 + $0xc0] sm:$0xff]
  %v340 = vld [vmem:[%s7 + $0xc8] sm:$0xff]
  %v341 = vld [vmem:[%s7 + $0xd0] sm:$0xff]
  %v342 = vld [vmem:[%s7 + $0xd8] sm:$0xff]
  %v343 = vld [vmem:[%s7 + $0xe0] sm:$0xff]
  %v344 = vld [vmem:[%s7 + $0xe8] sm:$0xff]
  %v345 = vld [vmem:[%s7 + $0xf0] sm:$0xff]
  %v346 = vld [vmem:[%s7 + $0xf8] sm:$0xff]
  %v347 = vld [vmem:[%s7 + $0x100] sm:$0xff]
  %v348 = vld [vmem:[%s7 + $0x108] sm:$0xff]
  %v349 = vld [vmem:[%s7 + $0x110] sm:$0xff]
  %v350 = vld [vmem:[%s7 + $0x118] sm:$0xff]
  %v351 = vld [vmem:[%s7 + $0x120] sm:$0xff]
  %v352 = vld [vmem:[%s7 + $0x128] sm:$0xff]
  %v353 = vld [vmem:[%s7 + $0x130] sm:$0xff]
  %v354 = vld [vmem:[%s7 + $0x138] sm:$0xff]
  %v355 = vld [vmem:[%s7 + $0x140] sm:$0xff]
  %v356 = vld [vmem:[%s7 + $0x148] sm:$0xff]
  %v357 = vld [vmem:[%s7 + $0x150] sm:$0xff]
  %v358 = vld [vmem:[%s7 + $0x158] sm:$0xff]
  %v359 = vld [vmem:[%s7 + $0x160] sm:$0xff]
  %v360 = vld [vmem:[%s7 + $0x168] sm:$0xff]
  %v361 = vld [vmem:[%s7 + $0x170] sm:$0xff]
  %v362 = vld [vmem:[%s7 + $0x178] sm:$0xff]
  %v363 = vld [vmem:[%s7 + $0x180] sm:$0xff]
  %v364 = vld [vmem:[%s7 + $0x188] sm:$0xff]
  %v365 = vld [vmem:[%s7 + $0x190] sm:$0xff]
  %v366 = vld [vmem:[%s7 + $0x198] sm:$0xff]
  %v367 = vld [vmem:[%s7 + $0x1a0] sm:$0xff]
  %v368 = vld [vmem:[%s7 + $0x1a8] sm:$0xff]
  %v369 = vld [vmem:[%s7 + $0x1b0] sm:$0xff]
  %v370 = vld [vmem:[%s7 + $0x1b8] sm:$0xff]
  %v371 = vld [vmem:[%s7 + $0x1c0] sm:$0xff]
  %v372 = vld [vmem:[%s7 + $0x1c8] sm:$0xff]
  %v373 = vld [vmem:[%s7 + $0x1d0] sm:$0xff]
  %v374 = vld [vmem:[%s7 + $0x1d8] sm:$0xff]
  %v375 = vld [vmem:[%s7 + $0x1e0] sm:$0xff]
  %v376 = vld [vmem:[%s7 + $0x1e8] sm:$0xff]
  %v377 = vld [vmem:[%s7 + $0x1f0] sm:$0xff]
  %v378 = vld [vmem:[%s7 + $0x1f8] sm:$0xff]
  %v379 = vld [vmem:[%s7 + $0x200] sm:$0xff]
  %v380 = vld [vmem:[%s7 + $0x208] sm:$0xff]
  %v381 = vld [vmem:[%s7 + $0x210] sm:$0xff]
  %v382 = vld [vmem:[%s7 + $0x218] sm:$0xff]
  %v383 = vld [vmem:[%s7 + $0x220] sm:$0xff]
  %v384 = vld [vmem:[%s7 + $0x228] sm:$0xff]
  %v385 = vld [vmem:[%s7 + $0x230] sm:$0xff]
  %v386 = vld [vmem:[%s7 + $0x238] sm:$0xff]
  %v387 = vld [vmem:[%s7 + $0x240] sm:$0xff]
  %v388 = vld [vmem:[%s7 + $0x248] sm:$0xff]
  %v389 = vld [vmem:[%s7 + $0x250] sm:$0xff]
  %v390 = vld [vmem:[%s7 + $0x258] sm:$0xff]
  %v391 = vld [vmem:[%s7 + $0x260] sm:$0xff]
  %v392 = vld [vmem:[%s7 + $0x268] sm:$0xff]
  %v393 = vld [vmem:[%s7 + $0x270] sm:$0xff]
  %v394 = vld [vmem:[%s7 + $0x278] sm:$0xff]
  %v395 = vld [vmem:[%s7 + $0x280] sm:$0xff]
  %v396 = vld [vmem:[%s7 + $0x288] sm:$0xff]
  %v397 = vld [vmem:[%s7 + $0x290] sm:$0xff]
  %v398 = vld [vmem:[%s7 + $0x298] sm:$0xff]
  %v399 = vld [vmem:[%s7 + $0x2a0] sm:$0xff]
  %v400 = vld [vmem:[%s7 + $0x2a8] sm:$0xff]
  %v401 = vld [vmem:[%s7 + $0x2b0] sm:$0xff]
  %v402 = vld [vmem:[%s7 + $0x2b8] sm:$0xff]
  %v403 = vld [vmem:[%s7 + $0x2c0] sm:$0xff]
  %v404 = vld [vmem:[%s7 + $0x2c8] sm:$0xff]
  %v405 = vld [vmem:[%s7 + $0x2d0] sm:$0xff]
  %v406 = vld [vmem:[%s7 + $0x2d8] sm:$0xff]
  %v407 = vld [vmem:[%s7 + $0x2e0] sm:$0xff]
  %v408 = vld [vmem:[%s7 + $0x2e8] sm:$0xff]
  %v409 = vld [vmem:[%s7 + $0x2f0] sm:$0xff]
  %v410 = vld [vmem:[%s7 + $0x2f8] sm:$0xff]
  %v411 = vld [vmem:[%s7 + $0x300] sm:$0xff]
  %v412 = vld [vmem:[%s7 + $0x308] sm:$0xff]
  %v413 = vld [vmem:[%s7 + $0x310] sm:$0xff]
  %v414 = vld [vmem:[%s7 + $0x318] sm:$0xff]
  %v415 = vld [vmem:[%s7 + $0x320] sm:$0xff]
  %v416 = vld [vmem:[%s7 + $0x328] sm:$0xff]
  %v417 = vld [vmem:[%s7 + $0x330] sm:$0xff]
  %v418 = vld [vmem:[%s7 + $0x338] sm:$0xff]
  %v419 = vld [vmem:[%s7 + $0x340] sm:$0xff]
  %v420 = vld [vmem:[%s7 + $0x348] sm:$0xff]
  %v421 = vld [vmem:[%s7 + $0x350] sm:$0xff]
  %v422 = vld [vmem:[%s7 + $0x358] sm:$0xff]
  %v423 = vld [vmem:[%s7 + $0x360] sm:$0xff]
  %v424 = vld [vmem:[%s7 + $0x368] sm:$0xff]
  %v425 = vld [vmem:[%s7 + $0x370] sm:$0xff]
  %v426 = vld [vmem:[%s7 + $0x378] sm:$0xff]
  %v427 = vld [vmem:[%s7 + $0x380] sm:$0xff]
  %v428 = vld [vmem:[%s7 + $0x388] sm:$0xff]
  %v429 = vld [vmem:[%s7 + $0x390] sm:$0xff]
  %v430 = vld [vmem:[%s7 + $0x398] sm:$0xff]
  %v431 = vld [vmem:[%s7 + $0x3a0] sm:$0xff]
  %v432 = vld [vmem:[%s7 + $0x3a8] sm:$0xff]
  %v433 = vld [vmem:[%s7 + $0x3b0] sm:$0xff]
  %v434 = vld [vmem:[%s7 + $0x3b8] sm:$0xff]
  %v435 = vld [vmem:[%s7 + $0x3c0] sm:$0xff]
  %v436 = vld [vmem:[%s7 + $0x3c8] sm:$0xff]
  %v437 = vld [vmem:[%s7 + $0x3d0] sm:$0xff]
  %v438 = vld [vmem:[%s7 + $0x3d8] sm:$0xff]
  %v439 = vld [vmem:[%s7 + $0x3e0] sm:$0xff]
  %v440 = vld [vmem:[%s7 + $0x3e8] sm:$0xff]
  %v441 = vld [vmem:[%s7 + $0x3f0] sm:$0xff]
  %v442 = vld [vmem:[%s7 + $0x3f8] sm:$0xff]
  %v443 = vld [vmem:[%s7 + $0x400] sm:$0xff]
  %v444 = vld [vmem:[%s7 + $0x408] sm:$0xff]
  %v445 = vld [vmem:[%s7 + $0x410] sm:$0xff]
  %v446 = vld [vmem:[%s7 + $0x418] sm:$0xff]
  %v447 = vld [vmem:[%s7 + $0x420] sm:$0xff]
  %v448 = vld [vmem:[%s7 + $0x428] sm:$0xff]
  %v449 = vld [vmem:[%s7 + $0x430] sm:$0xff]
  %v450 = vld [vmem:[%s7 + $0x438] sm:$0xff]
  %v451 = vld [vmem:[%s7 + $0x440] sm:$0xff]
  %v452 = vld [vmem:[%s7 + $0x448] sm:$0xff]
  %v453 = vld [vmem:[%s7 + $0x450] sm:$0xff]
  %v454 = vld [vmem:[%s7 + $0x458] sm:$0xff]
  %v455 = vld [vmem:[%s7 + $0x460] sm:$0xff]
  %v456 = vld [vmem:[%s7 + $0x468] sm:$0xff]
  %v457 = vld [vmem:[%s7 + $0x470] sm:$0xff]
  %v458 = vld [vmem:[%s7 + $0x478] sm:$0xff]
  %v459 = vld [vmem:[%s7 + $0x480] sm:$0xff]
  %v460 = vld [vmem:[%s7 + $0x488] sm:$0xff]
  %v461 = vld [vmem:[%s7 + $0x490] sm:$0xff]
  %v462 = vld [vmem:[%s7 + $0x498] sm:$0xff]
  %v463 = vld [vmem:[%s7 + $0x4a0] sm:$0xff]
  %v464 = vld [vmem:[%s7 + $0x4a8] sm:$0xff]
  %v465 = vld [vmem:[%s7 + $0x4b0] sm:$0xff]
  %v466 = vld [vmem:[%s7 + $0x4b8] sm:$0xff]
  %v467 = vld [vmem:[%s7 + $0x4c0] sm:$0xff]
  %v468 = vld [vmem:[%s7 + $0x4c8] sm:$0xff]
  %v469 = vld [vmem:[%s7 + $0x4d0] sm:$0xff]
  %v470 = vld [vmem:[%s7 + $0x4d8] sm:$0xff]
  %v471 = vld [vmem:[%s7 + $0x4e0] sm:$0xff]
  %v472 = vld [vmem:[%s7 + $0x4e8] sm:$0xff]
  %v473 = vld [vmem:[%s7 + $0x4f0] sm:$0xff]
  %v474 = vld [vmem:[%s7 + $0x4f8] sm:$0xff]
  %v475 = vld [vmem:[%s7 + $0x500] sm:$0xff]
  %v476 = vld [vmem:[%s7 + $0x508] sm:$0xff]
  %v477 = vld [vmem:[%s7 + $0x510] sm:$0xff]
  %v478 = vld [vmem:[%s7 + $0x518] sm:$0xff]
  %v479 = vld [vmem:[%s7 + $0x520] sm:$0xff]
  %v480 = vld [vmem:[%s7 + $0x528] sm:$0xff]
  %v481 = vld [vmem:[%s7 + $0x530] sm:$0xff]
  %v482 = vld [vmem:[%s7 + $0x538] sm:$0xff]
  %v483 = vld [vmem:[%s7 + $0x540] sm:$0xff]
  %v484 = vld [vmem:[%s7 + $0x548] sm:$0xff]
  %v485 = vld [vmem:[%s7 + $0x550] sm:$0xff]
  %v486 = vld [vmem:[%s7 + $0x558] sm:$0xff]
  %v487 = vld [vmem:[%s7 + $0x560] sm:$0xff]
  %v488 = vld [vmem:[%s7 + $0x568] sm:$0xff]
  %v489 = vld [vmem:[%s7 + $0x570] sm:$0xff]
  %v490 = vld [vmem:[%s7 + $0x578] sm:$0xff]
  %v491 = vld [vmem:[%s7 + $0x580] sm:$0xff]
  %v492 = vld [vmem:[%s7 + $0x588] sm:$0xff]
  %v493 = vld [vmem:[%s7 + $0x590] sm:$0xff]
  %v494 = vld [vmem:[%s7 + $0x598] sm:$0xff]
  %v495 = vld [vmem:[%s7 + $0x5a0] sm:$0xff]
  %v496 = vld [vmem:[%s7 + $0x5a8] sm:$0xff]
  %v497 = vld [vmem:[%s7 + $0x5b0] sm:$0xff]
  %v498 = vld [vmem:[%s7 + $0x5b8] sm:$0xff]
  %v499 = vld [vmem:[%s7 + $0x5c0] sm:$0xff]
  %v500 = vld [vmem:[%s7 + $0x5c8] sm:$0xff]
  %v501 = vld [vmem:[%s7 + $0x5d0] sm:$0xff]
  %v502 = vld [vmem:[%s7 + $0x5d8] sm:$0xff]
  %v503 = vld [vmem:[%s7 + $0x5e0] sm:$0xff]
  %v504 = vld [vmem:[%s7 + $0x5e8] sm:$0xff]
  %v505 = vld [vmem:[%s7 + $0x5f0] sm:$0xff]
  %v506 = vld [vmem:[%s7 + $0x5f8] sm:$0xff]
  %v507 = vld [vmem:[%s7 + $0x600] sm:$0xff]
  %v508 = vld [vmem:[%s7 + $0x608] sm:$0xff]
  %v509 = vld [vmem:[%s7 + $0x610] sm:$0xff]
  %v510 = vld [vmem:[%s7 + $0x618] sm:$0xff]
  %v511 = vld [vmem:[%s7 + $0x620] sm:$0xff]
  %v512 = vld [vmem:[%s7 + $0x628] sm:$0xff]
  %v513 = vld [vmem:[%s7 + $0x630] sm:$0xff]
  %v514 = vld [vmem:[%s7 + $0x638] sm:$0xff]
  %v515 = vld [vmem:[%s7 + $0x640] sm:$0xff]
  %v516 = vld [vmem:[%s7 + $0x648] sm:$0xff]
  %v517 = vld [vmem:[%s7 + $0x650] sm:$0xff]
  %v518 = vld [vmem:[%s7 + $0x658] sm:$0xff]
  %v519 = vld [vmem:[%s7 + $0x660] sm:$0xff]
  %v520 = vld [vmem:[%s7 + $0x668] sm:$0xff]
  %v521 = vld [vmem:[%s7 + $0x670] sm:$0xff]
  %v522 = vld [vmem:[%s7 + $0x678] sm:$0xff]
  %v523 = vld [vmem:[%s7 + $0x680] sm:$0xff]
  %v524 = vld [vmem:[%s7 + $0x688] sm:$0xff]
  %v525 = vld [vmem:[%s7 + $0x690] sm:$0xff]
  %v526 = vld [vmem:[%s7 + $0x698] sm:$0xff]
  %v527 = vld [vmem:[%s7 + $0x6a0] sm:$0xff]
  %v528 = vld [vmem:[%s7 + $0x6a8] sm:$0xff]
  %v529 = vld [vmem:[%s7 + $0x6b0] sm:$0xff]
  %v530 = vld [vmem:[%s7 + $0x6b8] sm:$0xff]
  %v531 = vld [vmem:[%s7 + $0x6c0] sm:$0xff]
  %v532 = vld [vmem:[%s7 + $0x6c8] sm:$0xff]
  %v533 = vld [vmem:[%s7 + $0x6d0] sm:$0xff]
  %v534 = vld [vmem:[%s7 + $0x6d8] sm:$0xff]
  %v535 = vld [vmem:[%s7 + $0x6e0] sm:$0xff]
  %v536 = vld [vmem:[%s7 + $0x6e8] sm:$0xff]
  %v537 = vld [vmem:[%s7 + $0x6f0] sm:$0xff]
  %v538 = vld [vmem:[%s7 + $0x6f8] sm:$0xff]
  %v539 = vld [vmem:[%s7 + $0x700] sm:$0xff]
  %v540 = vld [vmem:[%s7 + $0x708] sm:$0xff]
  %v541 = vld [vmem:[%s7 + $0x710] sm:$0xff]
  %v542 = vld [vmem:[%s7 + $0x718] sm:$0xff]
  %v543 = vld [vmem:[%s7 + $0x720] sm:$0xff]
  %v544 = vld [vmem:[%s7 + $0x728] sm:$0xff]
  %v545 = vld [vmem:[%s7 + $0x730] sm:$0xff]
  %v546 = vld [vmem:[%s7 + $0x738] sm:$0xff]
  %v547 = vld [vmem:[%s7 + $0x740] sm:$0xff]
  %v548 = vld [vmem:[%s7 + $0x748] sm:$0xff]
  %v549 = vld [vmem:[%s7 + $0x750] sm:$0xff]
  %v550 = vld [vmem:[%s7 + $0x758] sm:$0xff]
  %v551 = vld [vmem:[%s7 + $0x760] sm:$0xff]
  %v552 = vld [vmem:[%s7 + $0x768] sm:$0xff]
  %v553 = vld [vmem:[%s7 + $0x770] sm:$0xff]
  %v554 = vld [vmem:[%s7 + $0x778] sm:$0xff]
  %v555 = vld [vmem:[%s7 + $0x780] sm:$0xff]
  %v556 = vld [vmem:[%s7 + $0x788] sm:$0xff]
  %v557 = vld [vmem:[%s7 + $0x790] sm:$0xff]
  %v558 = vld [vmem:[%s7 + $0x798] sm:$0xff]
  %v559 = vld [vmem:[%s7 + $0x7a0] sm:$0xff]
  %v560 = vld [vmem:[%s7 + $0x7a8] sm:$0xff]
  %v561 = vld [vmem:[%s7 + $0x7b0] sm:$0xff]
  %v562 = vld [vmem:[%s7 + $0x7b8] sm:$0xff]
  %v563 = vld [vmem:[%s7 + $0x7c0] sm:$0xff]
  %v564 = vld [vmem:[%s7 + $0x7c8] sm:$0xff]
  %v565 = vld [vmem:[%s7 + $0x7d0] sm:$0xff]
  %v566 = vld [vmem:[%s7 + $0x7d8] sm:$0xff]
  %v567 = vld [vmem:[%s7 + $0x7e0] sm:$0xff]
  %v568 = vld [vmem:[%s7 + $0x7e8] sm:$0xff]
  %v569 = vld [vmem:[%s7 + $0x7f0] sm:$0xff]
  %v570 = vld [vmem:[%s7 + $0x7f8] sm:$0xff]
  %571 = vmatprep.subr.mxu0 %v346
  %572 = vmatpush1.msra.mxu0 %v345
  %573 = vmatprep.subr.mxu0 %v344
  %574 = vmatpush1.msra.mxu0 %v343
  %575 = vmatprep.subr.mxu0 %v342
  %576 = vmatpush1.msra.mxu0 %v341
  %577 = vmatprep.subr.mxu0 %v340
  %578 = vmatpush1.msra.mxu0 %v339
  %579 = vmatprep.subr.mxu0 %v338
  %580 = vmatpush1.msra.mxu0 %v337
  %581 = vmatprep.subr.mxu0 %v336
  %582 = vmatpush1.msra.mxu0 %v335
  %583 = vmatprep.subr.mxu0 %v334
  %584 = vmatpush1.msra.mxu0 %v333
  %585 = vmatprep.subr.mxu0 %v332
  %586 = vmatpush1.msra.mxu0 %v331
  %587 = vmatprep.subr.mxu0 %v330
  %588 = vmatpush1.msra.mxu0 %v329
  %589 = vmatprep.subr.mxu0 %v328
  %590 = vmatpush1.msra.mxu0 %v327
  %591 = vmatprep.subr.mxu0 %v326
  %592 = vmatpush1.msra.mxu0 %v325
  %593 = vmatprep.subr.mxu0 %v324
  %594 = vmatpush1.msra.mxu0 %v323
  %595 = vmatprep.subr.mxu0 %v322
  %596 = vmatpush1.msra.mxu0 %v321
  %597 = vmatprep.subr.mxu0 %v320
  %598 = vmatpush1.msra.mxu0 %v319
  %599 = vmatprep.subr.mxu0 %v318
  %600 = vmatpush1.msra.mxu0 %v317
  %601 = vmatprep.subr.mxu0 %v316
  %602 = vmatpush1.msra.mxu0 %v315
  %603 = vmatprep.subr.mxu0 %v378
  %604 = vmatpush2.msra.mxu0 %v377
  %605 = vmatprep.subr.mxu0 %v376
  %606 = vmatpush2.msra.mxu0 %v375
  %607 = vmatprep.subr.mxu0 %v374
  %608 = vmatpush2.msra.mxu0 %v373
  %609 = vmatprep.subr.mxu0 %v372
  %610 = vmatpush2.msra.mxu0 %v371
  %611 = vmatprep.subr.mxu0 %v370
  %612 = vmatpush2.msra.mxu0 %v369
  %613 = vmatprep.subr.mxu0 %v368
  %614 = vmatpush2.msra.mxu0 %v367
  %615 = vmatprep.subr.mxu0 %v366
  %616 = vmatpush2.msra.mxu0 %v365
  %617 = vmatprep.subr.mxu0 %v364
  %618 = vmatpush2.msra.mxu0 %v363
  %619 = vmatprep.subr.mxu0 %v362
  %620 = vmatpush2.msra.mxu0 %v361
  %621 = vmatprep.subr.mxu0 %v360
  %622 = vmatpush2.msra.mxu0 %v359
  %623 = vmatprep.subr.mxu0 %v358
  %624 = vmatpush2.msra.mxu0 %v357
  %625 = vmatprep.subr.mxu0 %v356
  %626 = vmatpush2.msra.mxu0 %v355
  %627 = vmatprep.subr.mxu0 %v354
  %628 = vmatpush2.msra.mxu0 %v353
  %629 = vmatprep.subr.mxu0 %v352
  %630 = vmatpush2.msra.mxu0 %v351
  %631 = vmatprep.subr.mxu0 %v350
  %632 = vmatpush2.msra.mxu0 %v349
  %633 = vmatprep.subr.mxu0 %v348
  %634 = vmatpush2.msra.mxu0 %v347
  %635 = vmatprep.mubr.f32.mxu0 %v308
  %636 = vmatmul.mubr.f32.gmra.mxu0 %v307
  %v637 = vpop.f32.mrf.mxu0
  %v638 = vadd.f32 0.0, %v637
  %v639 = vpop.f32.mrf.mxu0
  %v640 = vadd.f32 0.0, %v639
  %641 = vdwg.mxu0
  %642 = vmatprep.subr.mxu0 %v410
  %643 = vmatpush1.msra.mxu0 %v409
  %644 = vmatprep.subr.mxu0 %v408
  %645 = vmatpush1.msra.mxu0 %v407
  %646 = vmatprep.subr.mxu0 %v406
  %647 = vmatpush1.msra.mxu0 %v405
  %648 = vmatprep.subr.mxu0 %v404
  %649 = vmatpush1.msra.mxu0 %v403
  %650 = vmatprep.subr.mxu0 %v402
  %651 = vmatpush1.msra.mxu0 %v401
  %652 = vmatprep.subr.mxu0 %v400
  %653 = vmatpush1.msra.mxu0 %v399
  %654 = vmatprep.subr.mxu0 %v398
  %655 = vmatpush1.msra.mxu0 %v397
  %656 = vmatprep.subr.mxu0 %v396
  %657 = vmatpush1.msra.mxu0 %v395
  %658 = vmatprep.subr.mxu0 %v394
  %659 = vmatpush1.msra.mxu0 %v393
  %660 = vmatprep.subr.mxu0 %v392
  %661 = vmatpush1.msra.mxu0 %v391
  %662 = vmatprep.subr.mxu0 %v390
  %663 = vmatpush1.msra.mxu0 %v389
  %664 = vmatprep.subr.mxu0 %v388
  %665 = vmatpush1.msra.mxu0 %v387
  %666 = vmatprep.subr.mxu0 %v386
  %667 = vmatpush1.msra.mxu0 %v385
  %668 = vmatprep.subr.mxu0 %v384
  %669 = vmatpush1.msra.mxu0 %v383
  %670 = vmatprep.subr.mxu0 %v382
  %671 = vmatpush1.msra.mxu0 %v381
  %672 = vmatprep.subr.mxu0 %v380
  %673 = vmatpush1.msra.mxu0 %v379
  %674 = vmatprep.subr.mxu0 %v442
  %675 = vmatpush2.msra.mxu0 %v441
  %676 = vmatprep.subr.mxu0 %v440
  %677 = vmatpush2.msra.mxu0 %v439
  %678 = vmatprep.subr.mxu0 %v438
  %679 = vmatpush2.msra.mxu0 %v437
  %680 = vmatprep.subr.mxu0 %v436
  %681 = vmatpush2.msra.mxu0 %v435
  %682 = vmatprep.subr.mxu0 %v434
  %683 = vmatpush2.msra.mxu0 %v433
  %684 = vmatprep.subr.mxu0 %v432
  %685 = vmatpush2.msra.mxu0 %v431
  %686 = vmatprep.subr.mxu0 %v430
  %687 = vmatpush2.msra.mxu0 %v429
  %688 = vmatprep.subr.mxu0 %v428
  %689 = vmatpush2.msra.mxu0 %v427
  %690 = vmatprep.subr.mxu0 %v426
  %691 = vmatpush2.msra.mxu0 %v425
  %692 = vmatprep.subr.mxu0 %v424
  %693 = vmatpush2.msra.mxu0 %v423
  %694 = vmatprep.subr.mxu0 %v422
  %695 = vmatpush2.msra.mxu0 %v421
  %696 = vmatprep.subr.mxu0 %v420
  %697 = vmatpush2.msra.mxu0 %v419
  %698 = vmatprep.subr.mxu0 %v418
  %699 = vmatpush2.msra.mxu0 %v417
  %700 = vmatprep.subr.mxu0 %v416
  %701 = vmatpush2.msra.mxu0 %v415
  %702 = vmatprep.subr.mxu0 %v414
  %703 = vmatpush2.msra.mxu0 %v413
  %704 = vmatprep.subr.mxu0 %v412
  %705 = vmatpush2.msra.mxu0 %v411
  %706 = vmatprep.mubr.f32.mxu0 %v310
  %707 = vmatmul.mubr.f32.gmra.mxu0 %v309
  %v708 = vpop.f32.mrf.mxu0
  %v709 = vadd.f32 %v638, %v708
  %v710 = vpop.f32.mrf.mxu0
  %v711 = vadd.f32 %v640, %v710
  %712 = vdwg.mxu0
  %713 = vmatprep.subr.mxu0 %v474
  %714 = vmatpush1.msra.mxu0 %v473
  %715 = vmatprep.subr.mxu0 %v472
  %716 = vmatpush1.msra.mxu0 %v471
  %717 = vmatprep.subr.mxu0 %v470
  %718 = vmatpush1.msra.mxu0 %v469
  %719 = vmatprep.subr.mxu0 %v468
  %720 = vmatpush1.msra.mxu0 %v467
  %721 = vmatprep.subr.mxu0 %v466
  %722 = vmatpush1.msra.mxu0 %v465
  %723 = vmatprep.subr.mxu0 %v464
  %724 = vmatpush1.msra.mxu0 %v463
  %725 = vmatprep.subr.mxu0 %v462
  %726 = vmatpush1.msra.mxu0 %v461
  %727 = vmatprep.subr.mxu0 %v460
  %728 = vmatpush1.msra.mxu0 %v459
  %729 = vmatprep.subr.mxu0 %v458
  %730 = vmatpush1.msra.mxu0 %v457
  %731 = vmatprep.subr.mxu0 %v456
  %732 = vmatpush1.msra.mxu0 %v455
  %733 = vmatprep.subr.mxu0 %v454
  %734 = vmatpush1.msra.mxu0 %v453
  %735 = vmatprep.subr.mxu0 %v452
  %736 = vmatpush1.msra.mxu0 %v451
  %737 = vmatprep.subr.mxu0 %v450
  %738 = vmatpush1.msra.mxu0 %v449
  %739 = vmatprep.subr.mxu0 %v448
  %740 = vmatpush1.msra.mxu0 %v447
  %741 = vmatprep.subr.mxu0 %v446
  %742 = vmatpush1.msra.mxu0 %v445
  %743 = vmatprep.subr.mxu0 %v444
  %744 = vmatpush1.msra.mxu0 %v443
  %745 = vmatprep.subr.mxu0 %v506
  %746 = vmatpush2.msra.mxu0 %v505
  %747 = vmatprep.subr.mxu0 %v504
  %748 = vmatpush2.msra.mxu0 %v503
  %749 = vmatprep.subr.mxu0 %v502
  %750 = vmatpush2.msra.mxu0 %v501
  %751 = vmatprep.subr.mxu0 %v500
  %752 = vmatpush2.msra.mxu0 %v499
  %753 = vmatprep.subr.mxu0 %v498
  %754 = vmatpush2.msra.mxu0 %v497
  %755 = vmatprep.subr.mxu0 %v496
  %756 = vmatpush2.msra.mxu0 %v495
  %757 = vmatprep.subr.mxu0 %v494
  %758 = vmatpush2.msra.mxu0 %v493
  %759 = vmatprep.subr.mxu0 %v492
  %760 = vmatpush2.msra.mxu0 %v491
  %761 = vmatprep.subr.mxu0 %v490
  %762 = vmatpush2.msra.mxu0 %v489
  %763 = vmatprep.subr.mxu0 %v488
  %764 = vmatpush2.msra.mxu0 %v487
  %765 = vmatprep.subr.mxu0 %v486
  %766 = vmatpush2.msra.mxu0 %v485
  %767 = vmatprep.subr.mxu0 %v484
  %768 = vmatpush2.msra.mxu0 %v483
  %769 = vmatprep.subr.mxu0 %v482
  %770 = vmatpush2.msra.mxu0 %v481
  %771 = vmatprep.subr.mxu0 %v480
  %772 = vmatpush2.msra.mxu0 %v479
  %773 = vmatprep.subr.mxu0 %v478
  %774 = vmatpush2.msra.mxu0 %v477
  %775 = vmatprep.subr.mxu0 %v476
  %776 = vmatpush2.msra.mxu0 %v475
  %777 = vmatprep.mubr.f32.mxu0 %v312
  %778 = vmatmul.mubr.f32.gmra.mxu0 %v311
  %v779 = vpop.f32.mrf.mxu0
  %v780 = vadd.f32 %v709, %v779
  %v781 = vpop.f32.mrf.mxu0
  %v782 = vadd.f32 %v711, %v781
  %783 = vdwg.mxu0
  %784 = vmatprep.subr.mxu0 %v538
  %785 = vmatpush1.msra.mxu0 %v537
  %786 = vmatprep.subr.mxu0 %v536
  %787 = vmatpush1.msra.mxu0 %v535
  %788 = vmatprep.subr.mxu0 %v534
  %789 = vmatpush1.msra.mxu0 %v533
  %790 = vmatprep.subr.mxu0 %v532
  %791 = vmatpush1.msra.mxu0 %v531
  %792 = vmatprep.subr.mxu0 %v530
  %793 = vmatpush1.msra.mxu0 %v529
  %794 = vmatprep.subr.mxu0 %v528
  %795 = vmatpush1.msra.mxu0 %v527
  %796 = vmatprep.subr.mxu0 %v526
  %797 = vmatpush1.msra.mxu0 %v525
  %798 = vmatprep.subr.mxu0 %v524
  %799 = vmatpush1.msra.mxu0 %v523
  %800 = vmatprep.subr.mxu0 %v522
  %801 = vmatpush1.msra.mxu0 %v521
  %802 = vmatprep.subr.mxu0 %v520
  %803 = vmatpush1.msra.mxu0 %v519
  %804 = vmatprep.subr.mxu0 %v518
  %805 = vmatpush1.msra.mxu0 %v517
  %806 = vmatprep.subr.mxu0 %v516
  %807 = vmatpush1.msra.mxu0 %v515
  %808 = vmatprep.subr.mxu0 %v514
  %809 = vmatpush1.msra.mxu0 %v513
  %810 = vmatprep.subr.mxu0 %v512
  %811 = vmatpush1.msra.mxu0 %v511
  %812 = vmatprep.subr.mxu0 %v510
  %813 = vmatpush1.msra.mxu0 %v509
  %814 = vmatprep.subr.mxu0 %v508
  %815 = vmatpush1.msra.mxu0 %v507
  %816 = vmatprep.subr.mxu0 %v570
  %817 = vmatpush2.msra.mxu0 %v569
  %818 = vmatprep.subr.mxu0 %v568
  %819 = vmatpush2.msra.mxu0 %v567
  %820 = vmatprep.subr.mxu0 %v566
  %821 = vmatpush2.msra.mxu0 %v565
  %822 = vmatprep.subr.mxu0 %v564
  %823 = vmatpush2.msra.mxu0 %v563
  %824 = vmatprep.subr.mxu0 %v562
  %825 = vmatpush2.msra.mxu0 %v561
  %826 = vmatprep.subr.mxu0 %v560
  %827 = vmatpush2.msra.mxu0 %v559
  %828 = vmatprep.subr.mxu0 %v558
  %829 = vmatpush2.msra.mxu0 %v557
  %830 = vmatprep.subr.mxu0 %v556
  %831 = vmatpush2.msra.mxu0 %v555
  %832 = vmatprep.subr.mxu0 %v554
  %833 = vmatpush2.msra.mxu0 %v553
  %834 = vmatprep.subr.mxu0 %v552
  %835 = vmatpush2.msra.mxu0 %v551
  %836 = vmatprep.subr.mxu0 %v550
  %837 = vmatpush2.msra.mxu0 %v549
  %838 = vmatprep.subr.mxu0 %v548
  %839 = vmatpush2.msra.mxu0 %v547
  %840 = vmatprep.subr.mxu0 %v546
  %841 = vmatpush2.msra.mxu0 %v545
  %842 = vmatprep.subr.mxu0 %v544
  %843 = vmatpush2.msra.mxu0 %v543
  %844 = vmatprep.subr.mxu0 %v542
  %845 = vmatpush2.msra.mxu0 %v541
  %846 = vmatprep.subr.mxu0 %v540
  %847 = vmatpush2.msra.mxu0 %v539
  %848 = vmatprep.mubr.f32.mxu0 %v314
  %849 = vmatmul.mubr.f32.gmra.mxu0 %v313
  %v850 = vpop.f32.mrf.mxu0
  %v851 = vadd.f32 %v780, %v850
  %v852 = vpop.f32.mrf.mxu0
  %v853 = vadd.f32 %v782, %v852
  %854 = vdwg.mxu0
  %855 = vmatprep.subr.mxu0 %v306
  %856 = vmatpush1.msra.mxu0 %v305
  %857 = vmatprep.subr.mxu0 %v304
  %858 = vmatpush1.msra.mxu0 %v303
  %859 = vmatprep.subr.mxu0 %v302
  %860 = vmatpush1.msra.mxu0 %v301
  %861 = vmatprep.subr.mxu0 %v300
  %862 = vmatpush1.msra.mxu0 %v299
  %863 = vmatprep.subr.mxu0 %v298
  %864 = vmatpush1.msra.mxu0 %v297
  %865 = vmatprep.subr.mxu0 %v296
  %866 = vmatpush1.msra.mxu0 %v295
  %867 = vmatprep.subr.mxu0 %v294
  %868 = vmatpush1.msra.mxu0 %v293
  %869 = vmatprep.subr.mxu0 %v292
  %870 = vmatpush1.msra.mxu0 %v291
  %871 = vmatprep.subr.mxu0 %v290
  %872 = vmatpush1.msra.mxu0 %v289
  %873 = vmatprep.subr.mxu0 %v288
  %874 = vmatpush1.msra.mxu0 %v287
  %875 = vmatprep.subr.mxu0 %v286
  %876 = vmatpush1.msra.mxu0 %v285
  %877 = vmatprep.subr.mxu0 %v284
  %878 = vmatpush1.msra.mxu0 %v283
  %879 = vmatprep.subr.mxu0 %v282
  %880 = vmatpush1.msra.mxu0 %v281
  %881 = vmatprep.subr.mxu0 %v280
  %882 = vmatpush1.msra.mxu0 %v279
  %883 = vmatprep.subr.mxu0 %v278
  %884 = vmatpush1.msra.mxu0 %v277
  %885 = vmatprep.subr.mxu0 %v276
  %886 = vmatpush1.msra.mxu0 %v275
  %887 = vmatprep.subr.mxu0 0.0
  %888 = vmatpush2.msra.mxu0 0.0
  %889 = vmatprep.subr.mxu0 0.0
  %890 = vmatpush2.msra.mxu0 0.0
  %891 = vmatprep.subr.mxu0 0.0
  %892 = vmatpush2.msra.mxu0 0.0
  %893 = vmatprep.subr.mxu0 0.0
  %894 = vmatpush2.msra.mxu0 0.0
  %895 = vmatprep.subr.mxu0 0.0
  %896 = vmatpush2.msra.mxu0 0.0
  %897 = vmatprep.subr.mxu0 0.0
  %898 = vmatpush2.msra.mxu0 0.0
  %899 = vmatprep.subr.mxu0 0.0
  %900 = vmatpush2.msra.mxu0 0.0
  %901 = vmatprep.subr.mxu0 0.0
  %902 = vmatpush2.msra.mxu0 0.0
  %903 = vmatprep.subr.mxu0 0.0
  %904 = vmatpush2.msra.mxu0 0.0
  %905 = vmatprep.subr.mxu0 0.0
  %906 = vmatpush2.msra.mxu0 0.0
  %907 = vmatprep.subr.mxu0 0.0
  %908 = vmatpush2.msra.mxu0 0.0
  %909 = vmatprep.subr.mxu0 0.0
  %910 = vmatpush2.msra.mxu0 0.0
  %911 = vmatprep.subr.mxu0 0.0
  %912 = vmatpush2.msra.mxu0 0.0
  %913 = vmatprep.subr.mxu0 0.0
  %914 = vmatpush2.msra.mxu0 0.0
  %915 = vmatprep.subr.mxu0 0.0
  %916 = vmatpush2.msra.mxu0 0.0
  %917 = vmatprep.subr.mxu0 0.0
  %918 = vmatpush2.msra.mxu0 0.0
  %919 = vmatprep.mubr.f32.mxu0 0.0
  %920 = vmatmul.mubr.f32.gmra.mxu0 %v274
  %v921 = vpop.f32.mrf.mxu0
  %v922 = vadd.f32 %v851, %v921
  %v923 = vpop.f32.mrf.mxu0
  %v924 = vadd.f32 %v853, %v923
  %925 = vdwg.mxu0
  %v926 = vld [vmem:[%s8] sm:$0x3]
  %v928 = vlaneseq
  %v929 = vshrl.u32 %v928, 7
  %v930 = vsub.s32 0, %v929
  %v931 = vrot.slane %v926, %v930
  %v932 = vlaneseq
  %v933 = vshrl.u32 %v932, 7
  %v934 = vsub.s32 1, %v933
  %v935 = vrot.slane %v926, %v934
  %v938 = vadd.f32 %v922, %v931
  %v939 = vadd.f32 %v924, %v935
  %v940 = vmax.f32 %v938, 0.0
  %v941 = vmax.f32 %v939, 0.0
  %v942 = vld [vmem:[%s9] sm:$0xff]
  %v943 = vld [vmem:[%s9 + $0x8] sm:$0xff]
  %v944 = vld [vmem:[%s9 + $0x10] sm:$0xff]
  %v945 = vld [vmem:[%s9 + $0x18] sm:$0xff]
  %v946 = vld [vmem:[%s9 + $0x20] sm:$0xff]
  %v947 = vld [vmem:[%s9 + $0x28] sm:$0xff]
  %v948 = vld [vmem:[%s9 + $0x30] sm:$0xff]
  %v949 = vld [vmem:[%s9 + $0x38] sm:$0xff]
  %v950 = vld [vmem:[%s9 + $0x40] sm:$0xff]
  %v951 = vld [vmem:[%s9 + $0x48] sm:$0xff]
  %v952 = vld [vmem:[%s9 + $0x50] sm:$0xff]
  %v953 = vld [vmem:[%s9 + $0x58] sm:$0xff]
  %v954 = vld [vmem:[%s9 + $0x60] sm:$0xff]
  %v955 = vld [vmem:[%s9 + $0x68] sm:$0xff]
  %v956 = vld [vmem:[%s9 + $0x70] sm:$0xff]
  %v957 = vld [vmem:[%s9 + $0x78] sm:$0xff]
  %v958 = vld [vmem:[%s9 + $0x80] sm:$0xff]
  %v959 = vld [vmem:[%s9 + $0x88] sm:$0xff]
  %v960 = vld [vmem:[%s9 + $0x90] sm:$0xff]
  %v961 = vld [vmem:[%s9 + $0x98] sm:$0xff]
  %v962 = vld [vmem:[%s9 + $0xa0] sm:$0xff]
  %v963 = vld [vmem:[%s9 + $0xa8] sm:$0xff]
  %v964 = vld [vmem:[%s9 + $0xb0] sm:$0xff]
  %v965 = vld [vmem:[%s9 + $0xb8] sm:$0xff]
  %v966 = vld [vmem:[%s9 + $0xc0] sm:$0xff]
  %v967 = vld [vmem:[%s9 + $0xc8] sm:$0xff]
  %v968 = vld [vmem:[%s9 + $0xd0] sm:$0xff]
  %v969 = vld [vmem:[%s9 + $0xd8] sm:$0xff]
  %v970 = vld [vmem:[%s9 + $0xe0] sm:$0xff]
  %v971 = vld [vmem:[%s9 + $0xe8] sm:$0xff]
  %v972 = vld [vmem:[%s9 + $0xf0] sm:$0xff]
  %v973 = vld [vmem:[%s9 + $0xf8] sm:$0xff]
  %v974 = vld [vmem:[%s10] sm:$0x1]
  %v976 = vlaneseq
  %v977 = vshrl.u32 %v976, 7
  %v978 = vsub.s32 0, %v977
  %v979 = vrot.slane %v974, %v978
  %981 = vmatprep.subr.mxu0 0.0
  %982 = vmatpush1.msra.mxu0 %v957
  %983 = vmatprep.subr.mxu0 0.0
  %984 = vmatpush1.msra.mxu0 %v956
  %985 = vmatprep.subr.mxu0 0.0
  %986 = vmatpush1.msra.mxu0 %v955
  %987 = vmatprep.subr.mxu0 0.0
  %988 = vmatpush1.msra.mxu0 %v954
  %989 = vmatprep.subr.mxu0 0.0
  %990 = vmatpush1.msra.mxu0 %v953
  %991 = vmatprep.subr.mxu0 0.0
  %992 = vmatpush1.msra.mxu0 %v952
  %993 = vmatprep.subr.mxu0 0.0
  %994 = vmatpush1.msra.mxu0 %v951
  %995 = vmatprep.subr.mxu0 0.0
  %996 = vmatpush1.msra.mxu0 %v950
  %997 = vmatprep.subr.mxu0 0.0
  %998 = vmatpush1.msra.mxu0 %v949
  %999 = vmatprep.subr.mxu0 0.0
  %1000 = vmatpush1.msra.mxu0 %v948
  %1001 = vmatprep.subr.mxu0 0.0
  %1002 = vmatpush1.msra.mxu0 %v947
  %1003 = vmatprep.subr.mxu0 0.0
  %1004 = vmatpush1.msra.mxu0 %v946
  %1005 = vmatprep.subr.mxu0 0.0
  %1006 = vmatpush1.msra.mxu0 %v945
  %1007 = vmatprep.subr.mxu0 0.0
  %1008 = vmatpush1.msra.mxu0 %v944
  %1009 = vmatprep.subr.mxu0 0.0
  %1010 = vmatpush1.msra.mxu0 %v943
  %1011 = vmatprep.subr.mxu0 0.0
  %1012 = vmatpush1.msra.mxu0 %v942
  %1013 = vmatprep.subr.mxu0 0.0
  %1014 = vmatpush2.msra.mxu0 %v973
  %1015 = vmatprep.subr.mxu0 0.0
  %1016 = vmatpush2.msra.mxu0 %v972
  %1017 = vmatprep.subr.mxu0 0.0
  %1018 = vmatpush2.msra.mxu0 %v971
  %1019 = vmatprep.subr.mxu0 0.0
  %1020 = vmatpush2.msra.mxu0 %v970
  %1021 = vmatprep.subr.mxu0 0.0
  %1022 = vmatpush2.msra.mxu0 %v969
  %1023 = vmatprep.subr.mxu0 0.0
  %1024 = vmatpush2.msra.mxu0 %v968
  %1025 = vmatprep.subr.mxu0 0.0
  %1026 = vmatpush2.msra.mxu0 %v967
  %1027 = vmatprep.subr.mxu0 0.0
  %1028 = vmatpush2.msra.mxu0 %v966
  %1029 = vmatprep.subr.mxu0 0.0
  %1030 = vmatpush2.msra.mxu0 %v965
  %1031 = vmatprep.subr.mxu0 0.0
  %1032 = vmatpush2.msra.mxu0 %v964
  %1033 = vmatprep.subr.mxu0 0.0
  %1034 = vmatpush2.msra.mxu0 %v963
  %1035 = vmatprep.subr.mxu0 0.0
  %1036 = vmatpush2.msra.mxu0 %v962
  %1037 = vmatprep.subr.mxu0 0.0
  %1038 = vmatpush2.msra.mxu0 %v961
  %1039 = vmatprep.subr.mxu0 0.0
  %1040 = vmatpush2.msra.mxu0 %v960
  %1041 = vmatprep.subr.mxu0 0.0
  %1042 = vmatpush2.msra.mxu0 %v959
  %1043 = vmatprep.subr.mxu0 0.0
  %1044 = vmatpush2.msra.mxu0 %v958
  %1045 = vmatprep.mubr.f32.mxu0 %v941
  %1046 = vmatmul.mubr.f32.gmra.mxu0 %v940
  %v1047 = vpop.f32.mrf.mxu0
  %v1048 = vadd.f32 %v979, %v1047
  %v1049 = vpop.f32.mrf.mxu0
  %1050 = vdwg.mxu0
  %v1051 = vmax.f32 %v1048, 0.0
  %v1052 = vld [vmem:[%s13] sm:$0xff]
  %v1053 = vadd.f32 %v1051, %v1052
  %v1054 = vld [vmem:[%s11] sm:$0xff]
  %v1055 = vld [vmem:[%s11 + $0x8] sm:$0xff]
  %v1056 = vld [vmem:[%s11 + $0x10] sm:$0xff]
  %v1057 = vld [vmem:[%s11 + $0x18] sm:$0xff]
  %v1058 = vld [vmem:[%s11 + $0x20] sm:$0xff]
  %v1059 = vld [vmem:[%s11 + $0x28] sm:$0xff]
  %v1060 = vld [vmem:[%s11 + $0x30] sm:$0xff]
  %v1061 = vld [vmem:[%s11 + $0x38] sm:$0xff]
  %v1062 = vld [vmem:[%s11 + $0x40] sm:$0xff]
  %v1063 = vld [vmem:[%s11 + $0x48] sm:$0xff]
  %v1064 = vld [vmem:[%s11 + $0x50] sm:$0xff]
  %v1065 = vld [vmem:[%s11 + $0x58] sm:$0xff]
  %v1066 = vld [vmem:[%s11 + $0x60] sm:$0xff]
  %v1067 = vld [vmem:[%s11 + $0x68] sm:$0xff]
  %v1068 = vld [vmem:[%s11 + $0x70] sm:$0xff]
  %v1069 = vld [vmem:[%s11 + $0x78] sm:$0xff]
  %v1070 = vld [vmem:[%s12] sm:$0x1]
  %v1072 = vlaneseq
  %v1073 = vshrl.u32 %v1072, 7
  %v1074 = vsub.s32 0, %v1073
  %v1075 = vrot.slane %v1070, %v1074
  %1077 = vmatprep.subr.mxu0 0.0
  %1078 = vmatpush1.msra.mxu0 %v1069
  %1079 = vmatprep.subr.mxu0 0.0
  %1080 = vmatpush1.msra.mxu0 %v1068
  %1081 = vmatprep.subr.mxu0 0.0
  %1082 = vmatpush1.msra.mxu0 %v1067
  %1083 = vmatprep.subr.mxu0 0.0
  %1084 = vmatpush1.msra.mxu0 %v1066
  %1085 = vmatprep.subr.mxu0 0.0
  %1086 = vmatpush1.msra.mxu0 %v1065
  %1087 = vmatprep.subr.mxu0 0.0
  %1088 = vmatpush1.msra.mxu0 %v1064
  %1089 = vmatprep.subr.mxu0 0.0
  %1090 = vmatpush1.msra.mxu0 %v1063
  %1091 = vmatprep.subr.mxu0 0.0
  %1092 = vmatpush1.msra.mxu0 %v1062
  %1093 = vmatprep.subr.mxu0 0.0
  %1094 = vmatpush1.msra.mxu0 %v1061
  %1095 = vmatprep.subr.mxu0 0.0
  %1096 = vmatpush1.msra.mxu0 %v1060
  %1097 = vmatprep.subr.mxu0 0.0
  %1098 = vmatpush1.msra.mxu0 %v1059
  %1099 = vmatprep.subr.mxu0 0.0
  %1100 = vmatpush1.msra.mxu0 %v1058
  %1101 = vmatprep.subr.mxu0 0.0
  %1102 = vmatpush1.msra.mxu0 %v1057
  %1103 = vmatprep.subr.mxu0 0.0
  %1104 = vmatpush1.msra.mxu0 %v1056
  %1105 = vmatprep.subr.mxu0 0.0
  %1106 = vmatpush1.msra.mxu0 %v1055
  %1107 = vmatprep.subr.mxu0 0.0
  %1108 = vmatpush1.msra.mxu0 %v1054
  %1109 = vmatprep.subr.mxu0 0.0
  %1110 = vmatpush2.msra.mxu0 0.0
  %1111 = vmatprep.subr.mxu0 0.0
  %1112 = vmatpush2.msra.mxu0 0.0
  %1113 = vmatprep.subr.mxu0 0.0
  %1114 = vmatpush2.msra.mxu0 0.0
  %1115 = vmatprep.subr.mxu0 0.0
  %1116 = vmatpush2.msra.mxu0 0.0
  %1117 = vmatprep.subr.mxu0 0.0
  %1118 = vmatpush2.msra.mxu0 0.0
  %1119 = vmatprep.subr.mxu0 0.0
  %1120 = vmatpush2.msra.mxu0 0.0
  %1121 = vmatprep.subr.mxu0 0.0
  %1122 = vmatpush2.msra.mxu0 0.0
  %1123 = vmatprep.subr.mxu0 0.0
  %1124 = vmatpush2.msra.mxu0 0.0
  %1125 = vmatprep.subr.mxu0 0.0
  %1126 = vmatpush2.msra.mxu0 0.0
  %1127 = vmatprep.subr.mxu0 0.0
  %1128 = vmatpush2.msra.mxu0 0.0
  %1129 = vmatprep.subr.mxu0 0.0
  %1130 = vmatpush2.msra.mxu0 0.0
  %1131 = vmatprep.subr.mxu0 0.0
  %1132 = vmatpush2.msra.mxu0 0.0
  %1133 = vmatprep.subr.mxu0 0.0
  %1134 = vmatpush2.msra.mxu0 0.0
  %1135 = vmatprep.subr.mxu0 0.0
  %1136 = vmatpush2.msra.mxu0 0.0
  %1137 = vmatprep.subr.mxu0 0.0
  %1138 = vmatpush2.msra.mxu0 0.0
  %1139 = vmatprep.subr.mxu0 0.0
  %1140 = vmatpush2.msra.mxu0 0.0
  %1141 = vmatprep.mubr.f32.mxu0 0.0
  %1142 = vmatmul.mubr.f32.gmra.mxu0 %v1053
  %v1143 = vpop.f32.mrf.mxu0
  %v1144 = vadd.f32 %v1075, %v1143
  %v1145 = vpop.f32.mrf.mxu0
  %1146 = vdwg.mxu0
  %1147 = vst [vmem:[%s14] sm:$0xff] %v1144
  // Predicated region
  $region58: #{full_model_forward.7} parent=0 // pred_check
    _
  $region59: #{full_model_forward.7} parent=0 // pred_check_branch
    %1149 = sbr.rel (0) target = $region61
  $region60: #{full_model_forward.7} parent=0 // pred_region
    _
  $region61: #{full_model_forward.7} parent=0 // pred_fallthru
    _
  // Predicated region
  $region62: #{full_model_forward.7} parent=0 // pred_check
    _
  $region63: #{full_model_forward.7} parent=0 // pred_check_branch
    %1151 = sbr.rel (0) target = $region65
  $region64: #{full_model_forward.7} parent=0 // pred_region
    _
  $region65: #{full_model_forward.7} parent=0 // pred_fallthru
    _

</llo_original>
